<compile_context>
chip_gen: v7x
topology: tpu7x:2x2x1
jax: 0.10.0
libtpu: 0.0.40
codegen_flags: <defaults>
</compile_context>

<pallas_src>
import functools
import numpy as np
import jax
import jax.numpy as jnp
from jax import lax
from jax.experimental import pallas as pl
from jax.experimental.pallas import tpu as pltpu


# ---------------------------------------------------------------------------
# Value-space shift / overlap-add helpers (all static shapes, concat + add)
# ---------------------------------------------------------------------------
def _pad_zeros(p, axis, before, after):
    """Concat `before`/`after` rows of zeros around `p` along `axis`."""
    pieces = []
    if before:
        shp = list(p.shape); shp[axis] = before
        pieces.append(jnp.zeros(shp, p.dtype))
    pieces.append(p)
    if after:
        shp = list(p.shape); shp[axis] = after
        pieces.append(jnp.zeros(shp, p.dtype))
    if len(pieces) == 1:
        return p
    return jnp.concatenate(pieces, axis=axis)


def _overlap_add(parts, axis):
    """Overlap-add of K equal-shape arrays; part k is shifted by +k along `axis`."""
    K = len(parts)
    out = None
    for k, p in enumerate(parts):
        q = _pad_zeros(p, axis, k, K - 1 - k)
        out = q if out is None else out + q
    return out


# ---------------------------------------------------------------------------
# Fused kernel: grouped ConvTranspose3d (stride=1, pad=0), one batch item/step
# ---------------------------------------------------------------------------
def _conv_transpose_kernel(x_ref, w_ref, b_ref, o_ref, *,
                           D, H, W, KD, KH, KW, groups, ocpg):
    # x_ref: (D*H*W, Cin)        channels-last flattened voxels (one batch item)
    # w_ref: (KD*KH*KW, Cout)    per-tap weight rows, group-concatenated on Cout
    # b_ref: (1, Cout)
    # o_ref: (Do, Ho, Wo, Cout)  channels-last output block, Cout=128 lane-dense
    Cout = groups * ocpg
    DHW = D * H * W

    x = x_ref[...].astype(jnp.float32)          # (DHW, Cin)
    w_all = w_ref[...].astype(jnp.float32)      # (KT, Cout) -- one vreg

    # Group broadcast (icpg == 1): x_b[v, oc] = x[v, oc // ocpg].
    # Built with lane-iota + select (bulletproof VPU ops, no structural zeros).
    lane = lax.broadcasted_iota(jnp.int32, (DHW, Cout), 1)
    x_b = jnp.broadcast_to(x[:, 0:1], (DHW, Cout))
    for g in range(1, groups):
        x_b = jnp.where(lane >= g * ocpg,
                        jnp.broadcast_to(x[:, g:g + 1], (DHW, Cout)),
                        x_b)
    x4 = x_b.reshape(D, H, W, Cout)             # free: lane dim (Cout) unchanged

    # Pre-shift the activations along the W (sublane) axis once per kw tap and
    # reuse across all (kd, kh): xw[kw][d,h,wq,:] = x4[d,h,wq-kw,:] (0 outside).
    xw = [_pad_zeros(x4, 2, kw, KW - 1 - kw) for kw in range(KW)]   # (D,H,Wo,C)

    # Build the whole (Do, Ho, Wo, Cout) accumulator in value space.
    d_parts = []
    for kd in range(KD):
        h_parts = []
        for kh in range(KH):
            r = None
            for kw in range(KW):
                t = (kd * KH + kh) * KW + kw
                wrow = w_all[t].reshape(1, 1, 1, Cout)
                c = xw[kw] * wrow                       # VPU broadcast-multiply
                r = c if r is None else r + c
            h_parts.append(r)                           # (D, H,  Wo, Cout)
        d_parts.append(_overlap_add(h_parts, axis=1))   # (D, Ho, Wo, Cout)
    acc = _overlap_add(d_parts, axis=0)                 # (Do, Ho, Wo, Cout)

    # Bias + single full lane-dense store (the only pass over o_ref).
    o_ref[...] = (acc + b_ref[...].reshape(1, 1, 1, Cout)).astype(o_ref.dtype)


# ---------------------------------------------------------------------------
# ConvTranspose3d (stride=1, padding=0, grouped) wrapper
# ---------------------------------------------------------------------------
def conv_transpose3d(x_ncdhw, weight, bias, *, groups, channels_last_out=False):
    # x_ncdhw: (N, Cin, D, H, W) float32
    # weight : (Cin, Cout//groups, KD, KH, KW)   -- PyTorch ConvTranspose3d layout
    # bias   : (Cout,)
    N, Cin, D, H, W = x_ncdhw.shape
    wCin, ocpg, KD, KH, KW = weight.shape
    assert wCin == Cin and Cin % groups == 0
    icpg = Cin // groups
    # TODO(synk): kernel specializes to icpg == 1 (true for this module's valid config).
    assert icpg == 1, "kernel implements the icpg==1 grouped case"
    Cout = ocpg * groups
    Do, Ho, Wo = D + KD - 1, H + KH - 1, W + KW - 1
    KT = KD * KH * KW
    DHW = D * H * W

    # Dense per-tap weight rows: w_rows[t, g*ocpg + o] = weight[g, o, kd, kh, kw]
    # (no zero blocks, no spatial flip -- the scatter/overlap-add form uses the
    #  weight directly).  8 x 128 f32 = 4 KB.
    w_rows = jnp.transpose(weight, (2, 3, 4, 0, 1)).reshape(KT, Cout).astype(jnp.float32)
    bias2d = bias.reshape(1, Cout).astype(jnp.float32)

    # Tiny channels-last flatten of the activations (2 channels -> a few KB).
    x_flat = jnp.transpose(x_ncdhw, (0, 2, 3, 4, 1)).reshape(N, DHW, Cin)
    x_flat = x_flat.astype(jnp.float32)

    kernel = functools.partial(
        _conv_transpose_kernel,
        D=D, H=H, W=W, KD=KD, KH=KH, KW=KW, groups=groups, ocpg=ocpg)

    out_cl = pl.pallas_call(
        kernel,
        out_shape=jax.ShapeDtypeStruct((N, Do, Ho, Wo, Cout), jnp.float32),
        grid=(N,),
        in_specs=[
            pl.BlockSpec((None, DHW, Cin), lambda n: (n, 0, 0)),
            pl.BlockSpec((KT, Cout), lambda n: (0, 0)),
            pl.BlockSpec((1, Cout), lambda n: (0, 0)),
        ],
        out_specs=pl.BlockSpec((None, Do, Ho, Wo, Cout),
                               lambda n: (n, 0, 0, 0, 0)),
        compiler_params=pltpu.CompilerParams(dimension_semantics=("parallel",)),
    )(x_flat, w_rows, bias2d)

    if channels_last_out:
        # Preferred fast path for consumers that accept NDHWC: skips an extra
        # full HBM round trip + lane<->sublane shuffle of the output.
        return out_cl
    # PyTorch NCDHW layout (pure XLA glue kept only for layout parity).
    return jnp.transpose(out_cl, (0, 4, 1, 2, 3))


# ---------------------------------------------------------------------------
# Pure-numpy reference (direct conv_transpose definition) for correctness check
# ---------------------------------------------------------------------------
def _ref_conv_transpose3d(x, w, b, groups):
    N, Cin, D, H, W = x.shape
    _, ocpg, KD, KH, KW = w.shape
    icpg = Cin // groups
    Cout = ocpg * groups
    out = np.zeros((N, Cout, D + KD - 1, H + KH - 1, W + KW - 1), np.float64)
    for g in range(groups):
        xg = x[:, g * icpg:(g + 1) * icpg]
        wg = w[g * icpg:(g + 1) * icpg]
        for kd in range(KD):
            for kh in range(KH):
                for kw in range(KW):
                    contrib = np.einsum("ncdhw,co->nodhw", xg, wg[:, :, kd, kh, kw])
                    out[:, g * ocpg:(g + 1) * ocpg,
                        kd:kd + D, kh:kh + H, kw:kw + W] += contrib
    out += b[None, :, None, None, None]
    return out


if __name__ == "__main__":
    GROUPS = 2          # see TODO(synk) above: original groups=4 is invalid for Cin=2
    CIN, COUT, K = 2, 128, 2
    N, D, H, W = 2, 4, 8, 8    # small shapes consistent with the module's forward

    key = jax.random.PRNGKey(0)
    kx, kwgt, kb = jax.random.split(key, 3)
    x = jax.random.normal(kx, (N, CIN, D, H, W), dtype=jnp.float32)
    weight = 0.1 * jax.random.normal(kwgt, (CIN, COUT // GROUPS, K, K, K), dtype=jnp.float32)
    bias = 0.1 * jax.random.normal(kb, (COUT,), dtype=jnp.float32)

    fn = jax.jit(functools.partial(conv_transpose3d, groups=GROUPS))
    out = jax.block_until_ready(fn(x, weight, bias))

    ref = _ref_conv_transpose3d(
        np.asarray(x, np.float64), np.asarray(weight, np.float64),
        np.asarray(bias, np.float64), GROUPS)
    assert out.shape == ref.shape == (N, COUT, D + 1, H + 1, W + 1), (out.shape, ref.shape)
    np.testing.assert_allclose(np.asarray(out), ref, rtol=1e-4, atol=1e-4)
    print("KERNEL_OK")
</pallas_src>

<mosaic_0001>
module attributes {stable_mosaic.version = 11 : i64} {
  func.func @_conv_transpose_kernel(%arg0: i32, %arg1: memref<1x256x2xf32, #tpu.memory_space<vmem>>, %arg2: memref<8x128xf32, #tpu.memory_space<vmem>>, %arg3: memref<1x128xf32, #tpu.memory_space<vmem>>, %arg4: memref<1x5x9x9x128xf32, #tpu.memory_space<vmem>>) attributes {dimension_semantics = [#tpu.dimension_semantics<parallel>], iteration_bounds = array<i64: 2>, scalar_prefetch = 0 : i64, scratch_operands = 0 : i64, tpu.core_type = #tpu.core_type<tc>, window_params = [{transform_indices = @transform_0, window_bounds = array<i64: 1, 256, 2>}, {pipeline_mode = #tpu.pipeline_mode<synchronous>, transform_indices = @transform_1, window_bounds = array<i64: 8, 128>}, {pipeline_mode = #tpu.pipeline_mode<synchronous>, transform_indices = @transform_2, window_bounds = array<i64: 1, 128>}, {transform_indices = @transform_3, window_bounds = array<i64: 1, 5, 9, 9, 128>}]} {
    %c0 = arith.constant 0 : index
    %c0_0 = arith.constant 0 : index
    %c0_1 = arith.constant 0 : index
    %0 = vector.load %arg1[%c0, %c0_0, %c0_1] : memref<1x256x2xf32, #tpu.memory_space<vmem>>, vector<1x256x2xf32>
    %1 = vector.shape_cast %0 : vector<1x256x2xf32> to vector<256x2xf32>
    %c0_2 = arith.constant 0 : index
    %c0_3 = arith.constant 0 : index
    %2 = vector.load %arg2[%c0_2, %c0_3] : memref<8x128xf32, #tpu.memory_space<vmem>>, vector<8x128xf32>
    %3 = tpu.iota {dimensions = array<i32: 1>} : vector<256x128xi32>
    %4 = vector.extract_strided_slice %1 {offsets = [0, 0], sizes = [256, 1], strides = [1, 1]} : vector<256x2xf32> to vector<256x1xf32>
    %5 = vector.shape_cast %4 : vector<256x1xf32> to vector<256x1xf32>
    %6 = vector.broadcast %5 : vector<256x1xf32> to vector<256x128xf32>
    %c64_i32 = arith.constant 64 : i32
    %7 = vector.broadcast %c64_i32 : i32 to vector<256x128xi32>
    %8 = arith.cmpi sge, %3, %7 : vector<256x128xi32>
    %9 = vector.extract_strided_slice %1 {offsets = [0, 1], sizes = [256, 1], strides = [1, 1]} : vector<256x2xf32> to vector<256x1xf32>
    %10 = vector.shape_cast %9 : vector<256x1xf32> to vector<256x1xf32>
    %11 = vector.broadcast %10 : vector<256x1xf32> to vector<256x128xf32>
    %12 = arith.select %8, %11, %6 : vector<256x128xi1>, vector<256x128xf32>
    %13 = vector.shape_cast %12 : vector<256x128xf32> to vector<4x8x8x128xf32>
    %cst = arith.constant 0.000000e+00 : f32
    %14 = vector.broadcast %cst : f32 to vector<4x8x1x128xf32>
    %15 = tpu.concatenate %13, %14 in 2 : vector<4x8x8x128xf32>, vector<4x8x1x128xf32> -> vector<4x8x9x128xf32>
    %cst_4 = arith.constant 0.000000e+00 : f32
    %16 = vector.broadcast %cst_4 : f32 to vector<4x8x1x128xf32>
    %17 = tpu.concatenate %16, %13 in 2 : vector<4x8x1x128xf32>, vector<4x8x8x128xf32> -> vector<4x8x9x128xf32>
    %18 = vector.extract_strided_slice %2 {offsets = [0, 0], sizes = [1, 128], strides = [1, 1]} : vector<8x128xf32> to vector<1x128xf32>
    %19 = vector.shape_cast %18 : vector<1x128xf32> to vector<128xf32>
    %20 = vector.shape_cast %19 : vector<128xf32> to vector<1x1x1x128xf32>
    %21 = vector.broadcast %20 : vector<1x1x1x128xf32> to vector<4x8x9x128xf32>
    %22 = arith.mulf %15, %21 : vector<4x8x9x128xf32>
    %23 = vector.extract_strided_slice %2 {offsets = [1, 0], sizes = [1, 128], strides = [1, 1]} : vector<8x128xf32> to vector<1x128xf32>
    %24 = vector.shape_cast %23 : vector<1x128xf32> to vector<128xf32>
    %25 = vector.shape_cast %24 : vector<128xf32> to vector<1x1x1x128xf32>
    %26 = vector.broadcast %25 : vector<1x1x1x128xf32> to vector<4x8x9x128xf32>
    %27 = arith.mulf %17, %26 : vector<4x8x9x128xf32>
    %28 = arith.addf %22, %27 : vector<4x8x9x128xf32>
    %29 = vector.extract_strided_slice %2 {offsets = [2, 0], sizes = [1, 128], strides = [1, 1]} : vector<8x128xf32> to vector<1x128xf32>
    %30 = vector.shape_cast %29 : vector<1x128xf32> to vector<128xf32>
    %31 = vector.shape_cast %30 : vector<128xf32> to vector<1x1x1x128xf32>
    %32 = vector.broadcast %31 : vector<1x1x1x128xf32> to vector<4x8x9x128xf32>
    %33 = arith.mulf %15, %32 : vector<4x8x9x128xf32>
    %34 = vector.extract_strided_slice %2 {offsets = [3, 0], sizes = [1, 128], strides = [1, 1]} : vector<8x128xf32> to vector<1x128xf32>
    %35 = vector.shape_cast %34 : vector<1x128xf32> to vector<128xf32>
    %36 = vector.shape_cast %35 : vector<128xf32> to vector<1x1x1x128xf32>
    %37 = vector.broadcast %36 : vector<1x1x1x128xf32> to vector<4x8x9x128xf32>
    %38 = arith.mulf %17, %37 : vector<4x8x9x128xf32>
    %39 = arith.addf %33, %38 : vector<4x8x9x128xf32>
    %cst_5 = arith.constant 0.000000e+00 : f32
    %40 = vector.broadcast %cst_5 : f32 to vector<4x1x9x128xf32>
    %41 = tpu.concatenate %28, %40 in 1 : vector<4x8x9x128xf32>, vector<4x1x9x128xf32> -> vector<4x9x9x128xf32>
    %cst_6 = arith.constant 0.000000e+00 : f32
    %42 = vector.broadcast %cst_6 : f32 to vector<4x1x9x128xf32>
    %43 = tpu.concatenate %42, %39 in 1 : vector<4x1x9x128xf32>, vector<4x8x9x128xf32> -> vector<4x9x9x128xf32>
    %44 = arith.addf %41, %43 : vector<4x9x9x128xf32>
    %45 = vector.extract_strided_slice %2 {offsets = [4, 0], sizes = [1, 128], strides = [1, 1]} : vector<8x128xf32> to vector<1x128xf32>
    %46 = vector.shape_cast %45 : vector<1x128xf32> to vector<128xf32>
    %47 = vector.shape_cast %46 : vector<128xf32> to vector<1x1x1x128xf32>
    %48 = vector.broadcast %47 : vector<1x1x1x128xf32> to vector<4x8x9x128xf32>
    %49 = arith.mulf %15, %48 : vector<4x8x9x128xf32>
    %50 = vector.extract_strided_slice %2 {offsets = [5, 0], sizes = [1, 128], strides = [1, 1]} : vector<8x128xf32> to vector<1x128xf32>
    %51 = vector.shape_cast %50 : vector<1x128xf32> to vector<128xf32>
    %52 = vector.shape_cast %51 : vector<128xf32> to vector<1x1x1x128xf32>
    %53 = vector.broadcast %52 : vector<1x1x1x128xf32> to vector<4x8x9x128xf32>
    %54 = arith.mulf %17, %53 : vector<4x8x9x128xf32>
    %55 = arith.addf %49, %54 : vector<4x8x9x128xf32>
    %56 = vector.extract_strided_slice %2 {offsets = [6, 0], sizes = [1, 128], strides = [1, 1]} : vector<8x128xf32> to vector<1x128xf32>
    %57 = vector.shape_cast %56 : vector<1x128xf32> to vector<128xf32>
    %58 = vector.shape_cast %57 : vector<128xf32> to vector<1x1x1x128xf32>
    %59 = vector.broadcast %58 : vector<1x1x1x128xf32> to vector<4x8x9x128xf32>
    %60 = arith.mulf %15, %59 : vector<4x8x9x128xf32>
    %61 = vector.extract_strided_slice %2 {offsets = [7, 0], sizes = [1, 128], strides = [1, 1]} : vector<8x128xf32> to vector<1x128xf32>
    %62 = vector.shape_cast %61 : vector<1x128xf32> to vector<128xf32>
    %63 = vector.shape_cast %62 : vector<128xf32> to vector<1x1x1x128xf32>
    %64 = vector.broadcast %63 : vector<1x1x1x128xf32> to vector<4x8x9x128xf32>
    %65 = arith.mulf %17, %64 : vector<4x8x9x128xf32>
    %66 = arith.addf %60, %65 : vector<4x8x9x128xf32>
    %cst_7 = arith.constant 0.000000e+00 : f32
    %67 = vector.broadcast %cst_7 : f32 to vector<4x1x9x128xf32>
    %68 = tpu.concatenate %55, %67 in 1 : vector<4x8x9x128xf32>, vector<4x1x9x128xf32> -> vector<4x9x9x128xf32>
    %cst_8 = arith.constant 0.000000e+00 : f32
    %69 = vector.broadcast %cst_8 : f32 to vector<4x1x9x128xf32>
    %70 = tpu.concatenate %69, %66 in 1 : vector<4x1x9x128xf32>, vector<4x8x9x128xf32> -> vector<4x9x9x128xf32>
    %71 = arith.addf %68, %70 : vector<4x9x9x128xf32>
    %cst_9 = arith.constant 0.000000e+00 : f32
    %72 = vector.broadcast %cst_9 : f32 to vector<1x9x9x128xf32>
    %73 = tpu.concatenate %44, %72 in 0 : vector<4x9x9x128xf32>, vector<1x9x9x128xf32> -> vector<5x9x9x128xf32>
    %cst_10 = arith.constant 0.000000e+00 : f32
    %74 = vector.broadcast %cst_10 : f32 to vector<1x9x9x128xf32>
    %75 = tpu.concatenate %74, %71 in 0 : vector<1x9x9x128xf32>, vector<4x9x9x128xf32> -> vector<5x9x9x128xf32>
    %76 = arith.addf %73, %75 : vector<5x9x9x128xf32>
    %c0_11 = arith.constant 0 : index
    %c0_12 = arith.constant 0 : index
    %77 = vector.load %arg3[%c0_11, %c0_12] : memref<1x128xf32, #tpu.memory_space<vmem>>, vector<1x128xf32>
    %78 = vector.shape_cast %77 : vector<1x128xf32> to vector<1x1x1x128xf32>
    %79 = vector.broadcast %78 : vector<1x1x1x128xf32> to vector<5x9x9x128xf32>
    %80 = arith.addf %76, %79 : vector<5x9x9x128xf32>
    %c0_13 = arith.constant 0 : index
    %c0_14 = arith.constant 0 : index
    %c0_15 = arith.constant 0 : index
    %c0_16 = arith.constant 0 : index
    %c0_17 = arith.constant 0 : index
    %81 = vector.load %arg4[%c0_13, %c0_14, %c0_15, %c0_16, %c0_17] : memref<1x5x9x9x128xf32, #tpu.memory_space<vmem>>, vector<1x5x9x9x128xf32>
    %82 = vector.shape_cast %81 : vector<1x5x9x9x128xf32> to vector<5x9x9x128xf32>
    %83 = vector.shape_cast %80 : vector<5x9x9x128xf32> to vector<1x5x9x9x128xf32>
    tpu.vector_store %arg4[%c0_13, %c0_14, %c0_15, %c0_16, %c0_17], %83 {strides = array<i32>} : memref<1x5x9x9x128xf32, #tpu.memory_space<vmem>>, vector<1x5x9x9x128xf32>,
    return
  }
  func.func @transform_0(%arg0: i32) -> (i32, i32, i32) {
    %c0_i32 = arith.constant 0 : i32
    %c0_i32_0 = arith.constant 0 : i32
    %c0_i32_1 = arith.constant 0 : i32
    return %arg0, %c0_i32, %c0_i32_0 : i32, i32, i32
  }
  func.func @transform_1(%arg0: i32) -> (i32, i32) {
    %c0_i32 = arith.constant 0 : i32
    %c0_i32_0 = arith.constant 0 : i32
    %c0_i32_1 = arith.constant 0 : i32
    return %c0_i32, %c0_i32_0 : i32, i32
  }
  func.func @transform_2(%arg0: i32) -> (i32, i32) {
    %c0_i32 = arith.constant 0 : i32
    %c0_i32_0 = arith.constant 0 : i32
    %c0_i32_1 = arith.constant 0 : i32
    return %c0_i32, %c0_i32_0 : i32, i32
  }
  func.func @transform_3(%arg0: i32) -> (i32, i32, i32, i32, i32) {
    %c0_i32 = arith.constant 0 : i32
    %c0_i32_0 = arith.constant 0 : i32
    %c0_i32_1 = arith.constant 0 : i32
    %c0_i32_2 = arith.constant 0 : i32
    %c0_i32_3 = arith.constant 0 : i32
    return %arg0, %c0_i32, %c0_i32_0, %c0_i32_1, %c0_i32_2 : i32, i32, i32, i32, i32
  }
}

</mosaic_0001>

<llo_original>
// kernel: conv_transpose3d.1
$region0: #{conv_transpose3d.1}
  #allocation0 [shape = 'u32[]', space=smem, size = 0x4, offset = 0x4, fixed_abs, tag = 'smem constant byte address 0x4 - core index']
  #allocation1 [shape = 'u32[144,128]{1,0:T(1,128)}', space=vmem, size = 0x12000, scoped, tag = 'internal scratch']
  %s0 = inlined_call_operand.vmem [shape: f32[2,256,2], index: 0, kind: input, shape index: {}]
  %s1 = inlined_call_operand.vmem [shape: f32[8,128], index: 1, kind: input, shape index: {}]
  %s2 = inlined_call_operand.vmem [shape: f32[1,128], index: 2, kind: input, shape index: {}]
  %s3 = inlined_call_operand.vmem [shape: f32[2,5,9,9,128], index: 3, kind: output, shape index: {}]
  %s4 = sld [smem:[#allocation0]]
  $region45: #{conv_transpose3d.1} parent=0
    _
  %s6 = ssub.s32 1, %s4
  %s7 = scalar_select 0, %s6, %s4
  loop: start=0, step=1, limit=4
  $region2: #{conv_transpose3d.1} parent=0 // loop_pre_header
    _
  $region3: #{conv_transpose3d.1} parent=0 // loop_header
    %s9 = sphi 0, %s13
    %p10 = scmp.ge.s32.totalorder %s9, 4
    %s19 = sphi 0, %s21
    %s22 = sphi 0, %s19
    %s23 = sphi 0, %s22
    %s39 = sphi 0, %s23
    %s43 = sphi 0, %s43
    %s45 = sphi 0, %s43
    %s46 = sphi 0, %s45
    %s60 = sphi 0, %s46
    %s64 = sphi 0, %s64
    %s66 = sphi 0, %s64
    %s67 = sphi 0, %s66
    %s81 = sphi 0, %s67
    %s87 = sphi 0, %s89
    %s90 = sphi 0, %s87
    %s91 = sphi 0, %s90
    %s107 = sphi 0, %s91
  $region4: #{conv_transpose3d.1} parent=0 // loop_header_branch
    %12 = sbr.rel (%p10) target = $region8
  $region5: #{conv_transpose3d.1} parent=0 // loop_body
    %s14 = ssub.s32 %s9, 1
    %s15 = ssub.s32 %s9, 2
    %s16 = sadd.s32 %s9, 1
    %s17 = ssub.s32 %s9, %s16
    %p18 = scmp.eq.s32.totalorder %s17, 0
    %s20 = sadd.s32 %s19, 1
    %s21 = scalar_select %p18, %s19, %s20
    %p24 = pneg %p18
    %p25 = scmp.eq.s32.totalorder %s9, 1
    %p26 = por %p24, %p25
    %p27 = scmp.ne.s32.totalorder %s19, %s22
    %p28 = scmp.eq.s32.totalorder %s9, 0
    %p29 = por %p27, %p28
    %p30 = scmp.ne.s32.totalorder %s19, %s22
    %p31 = scmp.eq.s32.totalorder %s14, 1
    %p32 = por %p30, %p31
    %p33 = scmp.ne.s32.totalorder %s22, %s23
    %p34 = scmp.eq.s32.totalorder %s14, 0
    %p35 = por %p33, %p34
    %p36 = scmp.ne.s32.totalorder %s22, %s23
    %p37 = scmp.eq.s32.totalorder %s15, 1
    %p38 = por %p36, %p37
    %p40 = scmp.ne.s32.totalorder %s23, %s39
    %p41 = scmp.eq.s32.totalorder %s15, 0
    %p42 = por %p40, %p41
    %s44 = sadd.s32 %s43, 1
    %p47 = scmp.eq.s32.totalorder %s9, 1
    %p48 = scmp.ne.s32.totalorder %s43, %s45
    %p49 = scmp.eq.s32.totalorder %s9, 0
    %p50 = por %p48, %p49
    %p51 = scmp.ne.s32.totalorder %s43, %s45
    %p52 = scmp.eq.s32.totalorder %s14, 1
    %p53 = por %p51, %p52
    %p54 = scmp.ne.s32.totalorder %s45, %s46
    %p55 = scmp.eq.s32.totalorder %s14, 0
    %p56 = por %p54, %p55
    %p57 = scmp.ne.s32.totalorder %s45, %s46
    %p58 = scmp.eq.s32.totalorder %s15, 1
    %p59 = por %p57, %p58
    %p61 = scmp.ne.s32.totalorder %s46, %s60
    %p62 = scmp.eq.s32.totalorder %s15, 0
    %p63 = por %p61, %p62
    %s65 = sadd.s32 %s64, 1
    %p68 = scmp.eq.s32.totalorder %s9, 1
    %p69 = scmp.ne.s32.totalorder %s64, %s66
    %p70 = scmp.eq.s32.totalorder %s9, 0
    %p71 = por %p69, %p70
    %p72 = scmp.ne.s32.totalorder %s64, %s66
    %p73 = scmp.eq.s32.totalorder %s14, 1
    %p74 = por %p72, %p73
    %p75 = scmp.ne.s32.totalorder %s66, %s67
    %p76 = scmp.eq.s32.totalorder %s14, 0
    %p77 = por %p75, %p76
    %p78 = scmp.ne.s32.totalorder %s66, %s67
    %p79 = scmp.eq.s32.totalorder %s15, 1
    %p80 = por %p78, %p79
    %p82 = scmp.ne.s32.totalorder %s67, %s81
    %p83 = scmp.eq.s32.totalorder %s15, 0
    %p84 = por %p82, %p83
    %s85 = ssub.s32 %s9, %s16
    %p86 = scmp.eq.s32.totalorder %s85, 0
    %s88 = sadd.s32 %s87, 1
    %s89 = scalar_select %p86, %s87, %s88
    %p92 = pneg %p86
    %p93 = scmp.eq.s32.totalorder %s9, 1
    %p94 = por %p92, %p93
    %p95 = scmp.ne.s32.totalorder %s87, %s90
    %p96 = scmp.eq.s32.totalorder %s9, 0
    %p97 = por %p95, %p96
    %p98 = scmp.ne.s32.totalorder %s87, %s90
    %p99 = scmp.eq.s32.totalorder %s14, 1
    %p100 = por %p98, %p99
    %p101 = scmp.ne.s32.totalorder %s90, %s91
    %p102 = scmp.eq.s32.totalorder %s14, 0
    %p103 = por %p101, %p102
    %p104 = scmp.ne.s32.totalorder %s90, %s91
    %p105 = scmp.eq.s32.totalorder %s15, 1
    %p106 = por %p104, %p105
    %p108 = scmp.ne.s32.totalorder %s91, %s107
    %p109 = scmp.eq.s32.totalorder %s15, 0
    %p110 = por %p108, %p109
    %p111 = scmp.le.s32.totalorder 1, %s9
    %p112 = scmp.lt.s32.totalorder %s9, 3
    %p113 = pnand %p111, %p112
    %p114 = pneg %p113
    // Predicated region
    $region9: #{conv_transpose3d.1} parent=5 // pred_check
      _
    $region10: #{conv_transpose3d.1} parent=5 // pred_check_branch
      %116 = sbr.rel (%p113) target = $region12
    $region11: #{conv_transpose3d.1} parent=5 // pred_region
      %s117 = ssub.s32 %s9, 1
      // Predicated region
      $region13: #{conv_transpose3d.1} parent=11 // pred_check
        %p118 = pneg %p56
      $region14: #{conv_transpose3d.1} parent=11 // pred_check_branch
        %120 = sbr.rel (%p118) target = $region16
      $region15: #{conv_transpose3d.1} parent=11 // pred_region
        _
      $region16: #{conv_transpose3d.1} parent=11 // pred_fallthru
        _
      // Predicated region
      $region17: #{conv_transpose3d.1} parent=11 // pred_check
        %p121 = pneg %p77
      $region18: #{conv_transpose3d.1} parent=11 // pred_check_branch
        %123 = sbr.rel (%p121) target = $region20
      $region19: #{conv_transpose3d.1} parent=11 // pred_region
        _
      $region20: #{conv_transpose3d.1} parent=11 // pred_fallthru
        _
    $region12: #{conv_transpose3d.1} parent=5 // pred_fallthru
      _
    %p124 = scmp.lt.s32.totalorder %s9, 2
    // Predicated region
    $region21: #{conv_transpose3d.1} parent=5 // pred_check
      %p125 = pneg %p124
    $region22: #{conv_transpose3d.1} parent=5 // pred_check_branch
      %127 = sbr.rel (%p125) target = $region24
    $region23: #{conv_transpose3d.1} parent=5 // pred_region
      // Predicated region
      $region25: #{conv_transpose3d.1} parent=23 // pred_check
        %p128 = pneg %p29
      $region26: #{conv_transpose3d.1} parent=23 // pred_check_branch
        %130 = sbr.rel (%p128) target = $region28
      $region27: #{conv_transpose3d.1} parent=23 // pred_region
        %p131 = scmp.lt.s32.totalorder %s9, 1
        %s132 = scalar_select %p131, %s9, 1
        %s133 = smul.addr %s132, 32
        %s134 = smul.addr %s133, 8
        %s135 = scalar_lea.vmem %s0, %s134
      $region28: #{conv_transpose3d.1} parent=23 // pred_fallthru
        _
    $region24: #{conv_transpose3d.1} parent=5 // pred_fallthru
      _
    %p136 = scmp.le.s32.totalorder 1, %s9
    %p137 = scmp.lt.s32.totalorder %s9, 3
    %p138 = pnand %p136, %p137
    %p139 = pneg %p138
    // Predicated region
    $region29: #{conv_transpose3d.1} parent=5 // pred_check
      _
    $region30: #{conv_transpose3d.1} parent=5 // pred_check_branch
      %141 = sbr.rel (%p138) target = $region32
    $region31: #{conv_transpose3d.1} parent=5 // pred_region
      %s142 = ssub.s32 %s9, 1
      %p143 = scmp.lt.s32.totalorder %s14, 1
      %s144 = scalar_select %p143, %s14, 1
      %s145 = smul.addr %s144, 32
      %s146 = smul.addr %s145, 8
      %s147 = scalar_lea.vmem %s0, %s146
      %p148 = pneg %p35
      %p149 = pneg %p32
      %p150 = pneg %p56
      %p151 = pneg %p53
      %p152 = pneg %p77
      %p153 = pneg %p74
      %p154 = pneg %p103
      %p155 = pneg %p100
      %p156 = scmp.lt.s32.totalorder %s14, 1
      %s157 = scalar_select %p156, %s14, 1
      %s158 = smul.addr %s157, 90
      %s159 = smul.addr %s158, 8
      %s160 = scalar_lea.vmem %s3, %s159
      %p161 = scmp.lt.s32.totalorder %s14, 1
      %s162 = scalar_select %p161, %s14, 1
      %s163 = smul.addr %s162, 32
      %s164 = smul.addr %s163, 8
      %s165 = scalar_lea.vmem %s0, %s164
      %p166 = scmp.lt.s32.totalorder %s14, 1
      %s167 = scalar_select %p166, %s14, 1
      %s168 = smul.addr %s167, 90
      %s169 = smul.addr %s168, 8
      %s170 = scalar_lea.vmem %s3, %s169
      %v171 = vld [vmem:[%s165] sm:$0xff]
      %v172 = vld [vmem:[%s165 + $0x8] sm:$0xff]
      %v173 = vld [vmem:[%s165 + $0x10] sm:$0xff]
      %v174 = vld [vmem:[%s165 + $0x18] sm:$0xff]
      %v175 = vld [vmem:[%s165 + $0x20] sm:$0xff]
      %v176 = vld [vmem:[%s165 + $0x28] sm:$0xff]
      %v177 = vld [vmem:[%s165 + $0x30] sm:$0xff]
      %v178 = vld [vmem:[%s165 + $0x38] sm:$0xff]
      %v179 = vld [vmem:[%s165 + $0x40] sm:$0xff]
      %v180 = vld [vmem:[%s165 + $0x48] sm:$0xff]
      %v181 = vld [vmem:[%s165 + $0x50] sm:$0xff]
      %v182 = vld [vmem:[%s165 + $0x58] sm:$0xff]
      %v183 = vld [vmem:[%s165 + $0x60] sm:$0xff]
      %v184 = vld [vmem:[%s165 + $0x68] sm:$0xff]
      %v185 = vld [vmem:[%s165 + $0x70] sm:$0xff]
      %v186 = vld [vmem:[%s165 + $0x78] sm:$0xff]
      %v187 = vld [vmem:[%s165 + $0x80] sm:$0xff]
      %v188 = vld [vmem:[%s165 + $0x88] sm:$0xff]
      %v189 = vld [vmem:[%s165 + $0x90] sm:$0xff]
      %v190 = vld [vmem:[%s165 + $0x98] sm:$0xff]
      %v191 = vld [vmem:[%s165 + $0xa0] sm:$0xff]
      %v192 = vld [vmem:[%s165 + $0xa8] sm:$0xff]
      %v193 = vld [vmem:[%s165 + $0xb0] sm:$0xff]
      %v194 = vld [vmem:[%s165 + $0xb8] sm:$0xff]
      %v195 = vld [vmem:[%s165 + $0xc0] sm:$0xff]
      %v196 = vld [vmem:[%s165 + $0xc8] sm:$0xff]
      %v197 = vld [vmem:[%s165 + $0xd0] sm:$0xff]
      %v198 = vld [vmem:[%s165 + $0xd8] sm:$0xff]
      %v199 = vld [vmem:[%s165 + $0xe0] sm:$0xff]
      %v200 = vld [vmem:[%s165 + $0xe8] sm:$0xff]
      %v201 = vld [vmem:[%s165 + $0xf0] sm:$0xff]
      %v202 = vld [vmem:[%s165 + $0xf8] sm:$0xff]
      %v203 = vld [vmem:[%s1] sm:$0xff]
      %v204 = vlaneseq
      %v205 = vand.u32 %v204, 127
      %207 = vset.pattern.permute.xlu0 0
      %208 = vperm.xlu0 %207, %v171
      %v209 = vpop.permute.xlu0 %208
      %212 = vset.pattern.permute.xlu0 0
      %213 = vperm.xlu0 %212, %v172
      %v214 = vpop.permute.xlu0 %213
      %217 = vset.pattern.permute.xlu0 0
      %218 = vperm.xlu0 %217, %v173
      %v219 = vpop.permute.xlu0 %218
      %222 = vset.pattern.permute.xlu0 0
      %223 = vperm.xlu0 %222, %v174
      %v224 = vpop.permute.xlu0 %223
      %227 = vset.pattern.permute.xlu0 0
      %228 = vperm.xlu0 %227, %v175
      %v229 = vpop.permute.xlu0 %228
      %232 = vset.pattern.permute.xlu0 0
      %233 = vperm.xlu0 %232, %v176
      %v234 = vpop.permute.xlu0 %233
      %237 = vset.pattern.permute.xlu0 0
      %238 = vperm.xlu0 %237, %v177
      %v239 = vpop.permute.xlu0 %238
      %242 = vset.pattern.permute.xlu0 0
      %243 = vperm.xlu0 %242, %v178
      %v244 = vpop.permute.xlu0 %243
      %247 = vset.pattern.permute.xlu0 0
      %248 = vperm.xlu0 %247, %v179
      %v249 = vpop.permute.xlu0 %248
      %252 = vset.pattern.permute.xlu0 0
      %253 = vperm.xlu0 %252, %v180
      %v254 = vpop.permute.xlu0 %253
      %257 = vset.pattern.permute.xlu0 0
      %258 = vperm.xlu0 %257, %v181
      %v259 = vpop.permute.xlu0 %258
      %262 = vset.pattern.permute.xlu0 0
      %263 = vperm.xlu0 %262, %v182
      %v264 = vpop.permute.xlu0 %263
      %267 = vset.pattern.permute.xlu0 0
      %268 = vperm.xlu0 %267, %v183
      %v269 = vpop.permute.xlu0 %268
      %272 = vset.pattern.permute.xlu0 0
      %273 = vperm.xlu0 %272, %v184
      %v274 = vpop.permute.xlu0 %273
      %277 = vset.pattern.permute.xlu0 0
      %278 = vperm.xlu0 %277, %v185
      %v279 = vpop.permute.xlu0 %278
      %282 = vset.pattern.permute.xlu0 0
      %283 = vperm.xlu0 %282, %v186
      %v284 = vpop.permute.xlu0 %283
      %287 = vset.pattern.permute.xlu0 0
      %288 = vperm.xlu0 %287, %v187
      %v289 = vpop.permute.xlu0 %288
      %292 = vset.pattern.permute.xlu0 0
      %293 = vperm.xlu0 %292, %v188
      %v294 = vpop.permute.xlu0 %293
      %297 = vset.pattern.permute.xlu0 0
      %298 = vperm.xlu0 %297, %v189
      %v299 = vpop.permute.xlu0 %298
      %302 = vset.pattern.permute.xlu0 0
      %303 = vperm.xlu0 %302, %v190
      %v304 = vpop.permute.xlu0 %303
      %307 = vset.pattern.permute.xlu0 0
      %308 = vperm.xlu0 %307, %v191
      %v309 = vpop.permute.xlu0 %308
      %312 = vset.pattern.permute.xlu0 0
      %313 = vperm.xlu0 %312, %v192
      %v314 = vpop.permute.xlu0 %313
      %317 = vset.pattern.permute.xlu0 0
      %318 = vperm.xlu0 %317, %v193
      %v319 = vpop.permute.xlu0 %318
      %322 = vset.pattern.permute.xlu0 0
      %323 = vperm.xlu0 %322, %v194
      %v324 = vpop.permute.xlu0 %323
      %327 = vset.pattern.permute.xlu0 0
      %328 = vperm.xlu0 %327, %v195
      %v329 = vpop.permute.xlu0 %328
      %332 = vset.pattern.permute.xlu0 0
      %333 = vperm.xlu0 %332, %v196
      %v334 = vpop.permute.xlu0 %333
      %337 = vset.pattern.permute.xlu0 0
      %338 = vperm.xlu0 %337, %v197
      %v339 = vpop.permute.xlu0 %338
      %342 = vset.pattern.permute.xlu0 0
      %343 = vperm.xlu0 %342, %v198
      %v344 = vpop.permute.xlu0 %343
      %347 = vset.pattern.permute.xlu0 0
      %348 = vperm.xlu0 %347, %v199
      %v349 = vpop.permute.xlu0 %348
      %352 = vset.pattern.permute.xlu0 0
      %353 = vperm.xlu0 %352, %v200
      %v354 = vpop.permute.xlu0 %353
      %357 = vset.pattern.permute.xlu0 0
      %358 = vperm.xlu0 %357, %v201
      %v359 = vpop.permute.xlu0 %358
      %362 = vset.pattern.permute.xlu0 0
      %363 = vperm.xlu0 %362, %v202
      %v364 = vpop.permute.xlu0 %363
      %vm366 = vcmp.ge.s32.totalorder %v205, 64
      %367 = vset.pattern.permute.xlu0 1
      %368 = vperm.xlu0 %367, %v171
      %v369 = vpop.permute.xlu0 %368
      %371 = vset.pattern.permute.xlu0 1
      %372 = vperm.xlu0 %371, %v172
      %v373 = vpop.permute.xlu0 %372
      %375 = vset.pattern.permute.xlu0 1
      %376 = vperm.xlu0 %375, %v173
      %v377 = vpop.permute.xlu0 %376
      %379 = vset.pattern.permute.xlu0 1
      %380 = vperm.xlu0 %379, %v174
      %v381 = vpop.permute.xlu0 %380
      %383 = vset.pattern.permute.xlu0 1
      %384 = vperm.xlu0 %383, %v175
      %v385 = vpop.permute.xlu0 %384
      %387 = vset.pattern.permute.xlu0 1
      %388 = vperm.xlu0 %387, %v176
      %v389 = vpop.permute.xlu0 %388
      %391 = vset.pattern.permute.xlu0 1
      %392 = vperm.xlu0 %391, %v177
      %v393 = vpop.permute.xlu0 %392
      %395 = vset.pattern.permute.xlu0 1
      %396 = vperm.xlu0 %395, %v178
      %v397 = vpop.permute.xlu0 %396
      %399 = vset.pattern.permute.xlu0 1
      %400 = vperm.xlu0 %399, %v179
      %v401 = vpop.permute.xlu0 %400
      %403 = vset.pattern.permute.xlu0 1
      %404 = vperm.xlu0 %403, %v180
      %v405 = vpop.permute.xlu0 %404
      %407 = vset.pattern.permute.xlu0 1
      %408 = vperm.xlu0 %407, %v181
      %v409 = vpop.permute.xlu0 %408
      %411 = vset.pattern.permute.xlu0 1
      %412 = vperm.xlu0 %411, %v182
      %v413 = vpop.permute.xlu0 %412
      %415 = vset.pattern.permute.xlu0 1
      %416 = vperm.xlu0 %415, %v183
      %v417 = vpop.permute.xlu0 %416
      %419 = vset.pattern.permute.xlu0 1
      %420 = vperm.xlu0 %419, %v184
      %v421 = vpop.permute.xlu0 %420
      %423 = vset.pattern.permute.xlu0 1
      %424 = vperm.xlu0 %423, %v185
      %v425 = vpop.permute.xlu0 %424
      %427 = vset.pattern.permute.xlu0 1
      %428 = vperm.xlu0 %427, %v186
      %v429 = vpop.permute.xlu0 %428
      %431 = vset.pattern.permute.xlu0 1
      %432 = vperm.xlu0 %431, %v187
      %v433 = vpop.permute.xlu0 %432
      %435 = vset.pattern.permute.xlu0 1
      %436 = vperm.xlu0 %435, %v188
      %v437 = vpop.permute.xlu0 %436
      %439 = vset.pattern.permute.xlu0 1
      %440 = vperm.xlu0 %439, %v189
      %v441 = vpop.permute.xlu0 %440
      %443 = vset.pattern.permute.xlu0 1
      %444 = vperm.xlu0 %443, %v190
      %v445 = vpop.permute.xlu0 %444
      %447 = vset.pattern.permute.xlu0 1
      %448 = vperm.xlu0 %447, %v191
      %v449 = vpop.permute.xlu0 %448
      %451 = vset.pattern.permute.xlu0 1
      %452 = vperm.xlu0 %451, %v192
      %v453 = vpop.permute.xlu0 %452
      %455 = vset.pattern.permute.xlu0 1
      %456 = vperm.xlu0 %455, %v193
      %v457 = vpop.permute.xlu0 %456
      %459 = vset.pattern.permute.xlu0 1
      %460 = vperm.xlu0 %459, %v194
      %v461 = vpop.permute.xlu0 %460
      %463 = vset.pattern.permute.xlu0 1
      %464 = vperm.xlu0 %463, %v195
      %v465 = vpop.permute.xlu0 %464
      %467 = vset.pattern.permute.xlu0 1
      %468 = vperm.xlu0 %467, %v196
      %v469 = vpop.permute.xlu0 %468
      %471 = vset.pattern.permute.xlu0 1
      %472 = vperm.xlu0 %471, %v197
      %v473 = vpop.permute.xlu0 %472
      %475 = vset.pattern.permute.xlu0 1
      %476 = vperm.xlu0 %475, %v198
      %v477 = vpop.permute.xlu0 %476
      %479 = vset.pattern.permute.xlu0 1
      %480 = vperm.xlu0 %479, %v199
      %v481 = vpop.permute.xlu0 %480
      %483 = vset.pattern.permute.xlu0 1
      %484 = vperm.xlu0 %483, %v200
      %v485 = vpop.permute.xlu0 %484
      %487 = vset.pattern.permute.xlu0 1
      %488 = vperm.xlu0 %487, %v201
      %v489 = vpop.permute.xlu0 %488
      %491 = vset.pattern.permute.xlu0 1
      %492 = vperm.xlu0 %491, %v202
      %v493 = vpop.permute.xlu0 %492
      %v495 = vsel %vm366, %v369, %v209
      %v496 = vsel %vm366, %v373, %v214
      %v497 = vsel %vm366, %v377, %v219
      %v498 = vsel %vm366, %v381, %v224
      %v499 = vsel %vm366, %v385, %v229
      %v500 = vsel %vm366, %v389, %v234
      %v501 = vsel %vm366, %v393, %v239
      %v502 = vsel %vm366, %v397, %v244
      %v503 = vsel %vm366, %v401, %v249
      %v504 = vsel %vm366, %v405, %v254
      %v505 = vsel %vm366, %v409, %v259
      %v506 = vsel %vm366, %v413, %v264
      %v507 = vsel %vm366, %v417, %v269
      %v508 = vsel %vm366, %v421, %v274
      %v509 = vsel %vm366, %v425, %v279
      %v510 = vsel %vm366, %v429, %v284
      %v511 = vsel %vm366, %v433, %v289
      %v512 = vsel %vm366, %v437, %v294
      %v513 = vsel %vm366, %v441, %v299
      %v514 = vsel %vm366, %v445, %v304
      %v515 = vsel %vm366, %v449, %v309
      %v516 = vsel %vm366, %v453, %v314
      %v517 = vsel %vm366, %v457, %v319
      %v518 = vsel %vm366, %v461, %v324
      %v519 = vsel %vm366, %v465, %v329
      %v520 = vsel %vm366, %v469, %v334
      %v521 = vsel %vm366, %v473, %v339
      %v522 = vsel %vm366, %v477, %v344
      %v523 = vsel %vm366, %v481, %v349
      %v524 = vsel %vm366, %v485, %v354
      %v525 = vsel %vm366, %v489, %v359
      %v526 = vsel %vm366, %v493, %v364
      %v559 = vrot.slane %v495, 7
      %v560 = vrot.slane %v496, 7
      %v561 = vrot.slane %v497, 7
      %v562 = vrot.slane %v498, 7
      %v563 = vrot.slane %v499, 7
      %v564 = vrot.slane %v500, 7
      %v565 = vrot.slane %v501, 7
      %v566 = vrot.slane %v502, 7
      %v567 = vrot.slane %v503, 7
      %v568 = vrot.slane %v504, 7
      %v569 = vrot.slane %v505, 7
      %v570 = vrot.slane %v506, 7
      %v571 = vrot.slane %v507, 7
      %v572 = vrot.slane %v508, 7
      %v573 = vrot.slane %v509, 7
      %v574 = vrot.slane %v510, 7
      %v575 = vrot.slane %v511, 7
      %v576 = vrot.slane %v512, 7
      %v577 = vrot.slane %v513, 7
      %v578 = vrot.slane %v514, 7
      %v579 = vrot.slane %v515, 7
      %v580 = vrot.slane %v516, 7
      %v581 = vrot.slane %v517, 7
      %v582 = vrot.slane %v518, 7
      %v583 = vrot.slane %v519, 7
      %v584 = vrot.slane %v520, 7
      %v585 = vrot.slane %v521, 7
      %v586 = vrot.slane %v522, 7
      %v587 = vrot.slane %v523, 7
      %v588 = vrot.slane %v524, 7
      %v589 = vrot.slane %v525, 7
      %v590 = vrot.slane %v526, 7
      %vm623 = vcmask 1040384
      %v624 = vsel %vm623, 0.0, %v559
      %v625 = vsel %vm623, 0.0, %v560
      %v626 = vsel %vm623, 0.0, %v561
      %v627 = vsel %vm623, 0.0, %v562
      %v628 = vsel %vm623, 0.0, %v563
      %v629 = vsel %vm623, 0.0, %v564
      %v630 = vsel %vm623, 0.0, %v565
      %v631 = vsel %vm623, 0.0, %v566
      %v632 = vsel %vm623, 0.0, %v567
      %v633 = vsel %vm623, 0.0, %v568
      %v634 = vsel %vm623, 0.0, %v569
      %v635 = vsel %vm623, 0.0, %v570
      %v636 = vsel %vm623, 0.0, %v571
      %v637 = vsel %vm623, 0.0, %v572
      %v638 = vsel %vm623, 0.0, %v573
      %v639 = vsel %vm623, 0.0, %v574
      %v640 = vsel %vm623, 0.0, %v575
      %v641 = vsel %vm623, 0.0, %v576
      %v642 = vsel %vm623, 0.0, %v577
      %v643 = vsel %vm623, 0.0, %v578
      %v644 = vsel %vm623, 0.0, %v579
      %v645 = vsel %vm623, 0.0, %v580
      %v646 = vsel %vm623, 0.0, %v581
      %v647 = vsel %vm623, 0.0, %v582
      %v648 = vsel %vm623, 0.0, %v583
      %v649 = vsel %vm623, 0.0, %v584
      %v650 = vsel %vm623, 0.0, %v585
      %v651 = vsel %vm623, 0.0, %v586
      %v652 = vsel %vm623, 0.0, %v587
      %v653 = vsel %vm623, 0.0, %v588
      %v654 = vsel %vm623, 0.0, %v589
      %v655 = vsel %vm623, 0.0, %v590
      %v656 = vlaneseq
      %v657 = vshrl.u32 %v656, 7
      %v658 = vsub.s32 0, %v657
      %v659 = vrot.slane %v203, %v658
      %v660 = vmul.f32 %v495, %v659
      %v661 = vmul.f32 %v659, 0.0
      %v662 = vmul.f32 %v496, %v659
      %v663 = vmul.f32 %v497, %v659
      %v664 = vmul.f32 %v498, %v659
      %v665 = vmul.f32 %v499, %v659
      %v666 = vmul.f32 %v500, %v659
      %v667 = vmul.f32 %v501, %v659
      %v668 = vmul.f32 %v502, %v659
      %v669 = vmul.f32 %v503, %v659
      %v670 = vmul.f32 %v504, %v659
      %v671 = vmul.f32 %v505, %v659
      %v672 = vmul.f32 %v506, %v659
      %v673 = vmul.f32 %v507, %v659
      %v674 = vmul.f32 %v508, %v659
      %v675 = vmul.f32 %v509, %v659
      %v676 = vmul.f32 %v510, %v659
      %v677 = vmul.f32 %v511, %v659
      %v678 = vmul.f32 %v512, %v659
      %v679 = vmul.f32 %v513, %v659
      %v680 = vmul.f32 %v514, %v659
      %v681 = vmul.f32 %v515, %v659
      %v682 = vmul.f32 %v516, %v659
      %v683 = vmul.f32 %v517, %v659
      %v684 = vmul.f32 %v518, %v659
      %v685 = vmul.f32 %v519, %v659
      %v686 = vmul.f32 %v520, %v659
      %v687 = vmul.f32 %v521, %v659
      %v688 = vmul.f32 %v522, %v659
      %v689 = vmul.f32 %v523, %v659
      %v690 = vmul.f32 %v524, %v659
      %v691 = vmul.f32 %v525, %v659
      %v692 = vmul.f32 %v526, %v659
      %v693 = vlaneseq
      %v694 = vshrl.u32 %v693, 7
      %v695 = vsub.s32 1, %v694
      %v696 = vrot.slane %v203, %v695
      %v697 = vmul.f32 %v624, %v696
      %v698 = vmul.f32 %v559, %v696
      %v699 = vmul.f32 %v625, %v696
      %v700 = vmul.f32 %v560, %v696
      %v701 = vmul.f32 %v626, %v696
      %v702 = vmul.f32 %v561, %v696
      %v703 = vmul.f32 %v627, %v696
      %v704 = vmul.f32 %v562, %v696
      %v705 = vmul.f32 %v628, %v696
      %v706 = vmul.f32 %v563, %v696
      %v707 = vmul.f32 %v629, %v696
      %v708 = vmul.f32 %v564, %v696
      %v709 = vmul.f32 %v630, %v696
      %v710 = vmul.f32 %v565, %v696
      %v711 = vmul.f32 %v631, %v696
      %v712 = vmul.f32 %v566, %v696
      %v713 = vmul.f32 %v632, %v696
      %v714 = vmul.f32 %v567, %v696
      %v715 = vmul.f32 %v633, %v696
      %v716 = vmul.f32 %v568, %v696
      %v717 = vmul.f32 %v634, %v696
      %v718 = vmul.f32 %v569, %v696
      %v719 = vmul.f32 %v635, %v696
      %v720 = vmul.f32 %v570, %v696
      %v721 = vmul.f32 %v636, %v696
      %v722 = vmul.f32 %v571, %v696
      %v723 = vmul.f32 %v637, %v696
      %v724 = vmul.f32 %v572, %v696
      %v725 = vmul.f32 %v638, %v696
      %v726 = vmul.f32 %v573, %v696
      %v727 = vmul.f32 %v639, %v696
      %v728 = vmul.f32 %v574, %v696
      %v729 = vmul.f32 %v640, %v696
      %v730 = vmul.f32 %v575, %v696
      %v731 = vmul.f32 %v641, %v696
      %v732 = vmul.f32 %v576, %v696
      %v733 = vmul.f32 %v642, %v696
      %v734 = vmul.f32 %v577, %v696
      %v735 = vmul.f32 %v643, %v696
      %v736 = vmul.f32 %v578, %v696
      %v737 = vmul.f32 %v644, %v696
      %v738 = vmul.f32 %v579, %v696
      %v739 = vmul.f32 %v645, %v696
      %v740 = vmul.f32 %v580, %v696
      %v741 = vmul.f32 %v646, %v696
      %v742 = vmul.f32 %v581, %v696
      %v743 = vmul.f32 %v647, %v696
      %v744 = vmul.f32 %v582, %v696
      %v745 = vmul.f32 %v648, %v696
      %v746 = vmul.f32 %v583, %v696
      %v747 = vmul.f32 %v649, %v696
      %v748 = vmul.f32 %v584, %v696
      %v749 = vmul.f32 %v650, %v696
      %v750 = vmul.f32 %v585, %v696
      %v751 = vmul.f32 %v651, %v696
      %v752 = vmul.f32 %v586, %v696
      %v753 = vmul.f32 %v652, %v696
      %v754 = vmul.f32 %v587, %v696
      %v755 = vmul.f32 %v653, %v696
      %v756 = vmul.f32 %v588, %v696
      %v757 = vmul.f32 %v654, %v696
      %v758 = vmul.f32 %v589, %v696
      %v759 = vmul.f32 %v655, %v696
      %v760 = vmul.f32 %v590, %v696
      %v761 = vadd.f32 %v660, %v697
      %v762 = vadd.f32 %v661, %v698
      %v763 = vadd.f32 %v662, %v699
      %v764 = vadd.f32 %v661, %v700
      %v765 = vadd.f32 %v663, %v701
      %v766 = vadd.f32 %v661, %v702
      %v767 = vadd.f32 %v664, %v703
      %v768 = vadd.f32 %v661, %v704
      %v769 = vadd.f32 %v665, %v705
      %v770 = vadd.f32 %v661, %v706
      %v771 = vadd.f32 %v666, %v707
      %v772 = vadd.f32 %v661, %v708
      %v773 = vadd.f32 %v667, %v709
      %v774 = vadd.f32 %v661, %v710
      %v775 = vadd.f32 %v668, %v711
      %v776 = vadd.f32 %v661, %v712
      %v777 = vadd.f32 %v669, %v713
      %v778 = vadd.f32 %v661, %v714
      %v779 = vadd.f32 %v670, %v715
      %v780 = vadd.f32 %v661, %v716
      %v781 = vadd.f32 %v671, %v717
      %v782 = vadd.f32 %v661, %v718
      %v783 = vadd.f32 %v672, %v719
      %v784 = vadd.f32 %v661, %v720
      %v785 = vadd.f32 %v673, %v721
      %v786 = vadd.f32 %v661, %v722
      %v787 = vadd.f32 %v674, %v723
      %v788 = vadd.f32 %v661, %v724
      %v789 = vadd.f32 %v675, %v725
      %v790 = vadd.f32 %v661, %v726
      %v791 = vadd.f32 %v676, %v727
      %v792 = vadd.f32 %v661, %v728
      %v793 = vadd.f32 %v677, %v729
      %v794 = vadd.f32 %v661, %v730
      %v795 = vadd.f32 %v678, %v731
      %v796 = vadd.f32 %v661, %v732
      %v797 = vadd.f32 %v679, %v733
      %v798 = vadd.f32 %v661, %v734
      %v799 = vadd.f32 %v680, %v735
      %v800 = vadd.f32 %v661, %v736
      %v801 = vadd.f32 %v681, %v737
      %v802 = vadd.f32 %v661, %v738
      %v803 = vadd.f32 %v682, %v739
      %v804 = vadd.f32 %v661, %v740
      %v805 = vadd.f32 %v683, %v741
      %v806 = vadd.f32 %v661, %v742
      %v807 = vadd.f32 %v684, %v743
      %v808 = vadd.f32 %v661, %v744
      %v809 = vadd.f32 %v685, %v745
      %v810 = vadd.f32 %v661, %v746
      %v811 = vadd.f32 %v686, %v747
      %v812 = vadd.f32 %v661, %v748
      %v813 = vadd.f32 %v687, %v749
      %v814 = vadd.f32 %v661, %v750
      %v815 = vadd.f32 %v688, %v751
      %v816 = vadd.f32 %v661, %v752
      %v817 = vadd.f32 %v689, %v753
      %v818 = vadd.f32 %v661, %v754
      %v819 = vadd.f32 %v690, %v755
      %v820 = vadd.f32 %v661, %v756
      %v821 = vadd.f32 %v691, %v757
      %v822 = vadd.f32 %v661, %v758
      %v823 = vadd.f32 %v692, %v759
      %v824 = vadd.f32 %v661, %v760
      %v825 = vlaneseq
      %v826 = vshrl.u32 %v825, 7
      %v827 = vsub.s32 2, %v826
      %v828 = vrot.slane %v203, %v827
      %v829 = vmul.f32 %v495, %v828
      %v830 = vmul.f32 %v828, 0.0
      %v831 = vmul.f32 %v496, %v828
      %v832 = vmul.f32 %v497, %v828
      %v833 = vmul.f32 %v498, %v828
      %v834 = vmul.f32 %v499, %v828
      %v835 = vmul.f32 %v500, %v828
      %v836 = vmul.f32 %v501, %v828
      %v837 = vmul.f32 %v502, %v828
      %v838 = vmul.f32 %v503, %v828
      %v839 = vmul.f32 %v504, %v828
      %v840 = vmul.f32 %v505, %v828
      %v841 = vmul.f32 %v506, %v828
      %v842 = vmul.f32 %v507, %v828
      %v843 = vmul.f32 %v508, %v828
      %v844 = vmul.f32 %v509, %v828
      %v845 = vmul.f32 %v510, %v828
      %v846 = vmul.f32 %v511, %v828
      %v847 = vmul.f32 %v512, %v828
      %v848 = vmul.f32 %v513, %v828
      %v849 = vmul.f32 %v514, %v828
      %v850 = vmul.f32 %v515, %v828
      %v851 = vmul.f32 %v516, %v828
      %v852 = vmul.f32 %v517, %v828
      %v853 = vmul.f32 %v518, %v828
      %v854 = vmul.f32 %v519, %v828
      %v855 = vmul.f32 %v520, %v828
      %v856 = vmul.f32 %v521, %v828
      %v857 = vmul.f32 %v522, %v828
      %v858 = vmul.f32 %v523, %v828
      %v859 = vmul.f32 %v524, %v828
      %v860 = vmul.f32 %v525, %v828
      %v861 = vmul.f32 %v526, %v828
      %v862 = vlaneseq
      %v863 = vshrl.u32 %v862, 7
      %v864 = vsub.s32 3, %v863
      %v865 = vrot.slane %v203, %v864
      %v866 = vmul.f32 %v624, %v865
      %v867 = vmul.f32 %v559, %v865
      %v868 = vmul.f32 %v625, %v865
      %v869 = vmul.f32 %v560, %v865
      %v870 = vmul.f32 %v626, %v865
      %v871 = vmul.f32 %v561, %v865
      %v872 = vmul.f32 %v627, %v865
      %v873 = vmul.f32 %v562, %v865
      %v874 = vmul.f32 %v628, %v865
      %v875 = vmul.f32 %v563, %v865
      %v876 = vmul.f32 %v629, %v865
      %v877 = vmul.f32 %v564, %v865
      %v878 = vmul.f32 %v630, %v865
      %v879 = vmul.f32 %v565, %v865
      %v880 = vmul.f32 %v631, %v865
      %v881 = vmul.f32 %v566, %v865
      %v882 = vmul.f32 %v632, %v865
      %v883 = vmul.f32 %v567, %v865
      %v884 = vmul.f32 %v633, %v865
      %v885 = vmul.f32 %v568, %v865
      %v886 = vmul.f32 %v634, %v865
      %v887 = vmul.f32 %v569, %v865
      %v888 = vmul.f32 %v635, %v865
      %v889 = vmul.f32 %v570, %v865
      %v890 = vmul.f32 %v636, %v865
      %v891 = vmul.f32 %v571, %v865
      %v892 = vmul.f32 %v637, %v865
      %v893 = vmul.f32 %v572, %v865
      %v894 = vmul.f32 %v638, %v865
      %v895 = vmul.f32 %v573, %v865
      %v896 = vmul.f32 %v639, %v865
      %v897 = vmul.f32 %v574, %v865
      %v898 = vmul.f32 %v640, %v865
      %v899 = vmul.f32 %v575, %v865
      %v900 = vmul.f32 %v641, %v865
      %v901 = vmul.f32 %v576, %v865
      %v902 = vmul.f32 %v642, %v865
      %v903 = vmul.f32 %v577, %v865
      %v904 = vmul.f32 %v643, %v865
      %v905 = vmul.f32 %v578, %v865
      %v906 = vmul.f32 %v644, %v865
      %v907 = vmul.f32 %v579, %v865
      %v908 = vmul.f32 %v645, %v865
      %v909 = vmul.f32 %v580, %v865
      %v910 = vmul.f32 %v646, %v865
      %v911 = vmul.f32 %v581, %v865
      %v912 = vmul.f32 %v647, %v865
      %v913 = vmul.f32 %v582, %v865
      %v914 = vmul.f32 %v648, %v865
      %v915 = vmul.f32 %v583, %v865
      %v916 = vmul.f32 %v649, %v865
      %v917 = vmul.f32 %v584, %v865
      %v918 = vmul.f32 %v650, %v865
      %v919 = vmul.f32 %v585, %v865
      %v920 = vmul.f32 %v651, %v865
      %v921 = vmul.f32 %v586, %v865
      %v922 = vmul.f32 %v652, %v865
      %v923 = vmul.f32 %v587, %v865
      %v924 = vmul.f32 %v653, %v865
      %v925 = vmul.f32 %v588, %v865
      %v926 = vmul.f32 %v654, %v865
      %v927 = vmul.f32 %v589, %v865
      %v928 = vmul.f32 %v655, %v865
      %v929 = vmul.f32 %v590, %v865
      %v930 = vadd.f32 %v829, %v866
      %v931 = vadd.f32 %v830, %v867
      %v932 = vadd.f32 %v831, %v868
      %v933 = vadd.f32 %v830, %v869
      %v934 = vadd.f32 %v832, %v870
      %v935 = vadd.f32 %v830, %v871
      %v936 = vadd.f32 %v833, %v872
      %v937 = vadd.f32 %v830, %v873
      %v938 = vadd.f32 %v834, %v874
      %v939 = vadd.f32 %v830, %v875
      %v940 = vadd.f32 %v835, %v876
      %v941 = vadd.f32 %v830, %v877
      %v942 = vadd.f32 %v836, %v878
      %v943 = vadd.f32 %v830, %v879
      %v944 = vadd.f32 %v837, %v880
      %v945 = vadd.f32 %v830, %v881
      %v946 = vadd.f32 %v838, %v882
      %v947 = vadd.f32 %v830, %v883
      %v948 = vadd.f32 %v839, %v884
      %v949 = vadd.f32 %v830, %v885
      %v950 = vadd.f32 %v840, %v886
      %v951 = vadd.f32 %v830, %v887
      %v952 = vadd.f32 %v841, %v888
      %v953 = vadd.f32 %v830, %v889
      %v954 = vadd.f32 %v842, %v890
      %v955 = vadd.f32 %v830, %v891
      %v956 = vadd.f32 %v843, %v892
      %v957 = vadd.f32 %v830, %v893
      %v958 = vadd.f32 %v844, %v894
      %v959 = vadd.f32 %v830, %v895
      %v960 = vadd.f32 %v845, %v896
      %v961 = vadd.f32 %v830, %v897
      %v962 = vadd.f32 %v846, %v898
      %v963 = vadd.f32 %v830, %v899
      %v964 = vadd.f32 %v847, %v900
      %v965 = vadd.f32 %v830, %v901
      %v966 = vadd.f32 %v848, %v902
      %v967 = vadd.f32 %v830, %v903
      %v968 = vadd.f32 %v849, %v904
      %v969 = vadd.f32 %v830, %v905
      %v970 = vadd.f32 %v850, %v906
      %v971 = vadd.f32 %v830, %v907
      %v972 = vadd.f32 %v851, %v908
      %v973 = vadd.f32 %v830, %v909
      %v974 = vadd.f32 %v852, %v910
      %v975 = vadd.f32 %v830, %v911
      %v976 = vadd.f32 %v853, %v912
      %v977 = vadd.f32 %v830, %v913
      %v978 = vadd.f32 %v854, %v914
      %v979 = vadd.f32 %v830, %v915
      %v980 = vadd.f32 %v855, %v916
      %v981 = vadd.f32 %v830, %v917
      %v982 = vadd.f32 %v856, %v918
      %v983 = vadd.f32 %v830, %v919
      %v984 = vadd.f32 %v857, %v920
      %v985 = vadd.f32 %v830, %v921
      %v986 = vadd.f32 %v858, %v922
      %v987 = vadd.f32 %v830, %v923
      %v988 = vadd.f32 %v859, %v924
      %v989 = vadd.f32 %v830, %v925
      %v990 = vadd.f32 %v860, %v926
      %v991 = vadd.f32 %v830, %v927
      %v992 = vadd.f32 %v861, %v928
      %v993 = vadd.f32 %v830, %v929
      %v994 = vadd.f32 %v761, 0.0
      %v995 = vadd.f32 %v762, 0.0
      %v996 = vadd.f32 %v763, %v930
      %v997 = vadd.f32 %v764, %v931
      %v998 = vadd.f32 %v765, %v932
      %v999 = vadd.f32 %v766, %v933
      %v1000 = vadd.f32 %v767, %v934
      %v1001 = vadd.f32 %v768, %v935
      %v1002 = vadd.f32 %v769, %v936
      %v1003 = vadd.f32 %v770, %v937
      %v1004 = vadd.f32 %v771, %v938
      %v1005 = vadd.f32 %v772, %v939
      %v1006 = vadd.f32 %v773, %v940
      %v1007 = vadd.f32 %v774, %v941
      %v1008 = vadd.f32 %v775, %v942
      %v1009 = vadd.f32 %v776, %v943
      %v1010 = vadd.f32 %v944, 0.0
      %v1011 = vadd.f32 %v945, 0.0
      %v1012 = vadd.f32 %v777, 0.0
      %v1013 = vadd.f32 %v778, 0.0
      %v1014 = vadd.f32 %v779, %v946
      %v1015 = vadd.f32 %v780, %v947
      %v1016 = vadd.f32 %v781, %v948
      %v1017 = vadd.f32 %v782, %v949
      %v1018 = vadd.f32 %v783, %v950
      %v1019 = vadd.f32 %v784, %v951
      %v1020 = vadd.f32 %v785, %v952
      %v1021 = vadd.f32 %v786, %v953
      %v1022 = vadd.f32 %v787, %v954
      %v1023 = vadd.f32 %v788, %v955
      %v1024 = vadd.f32 %v789, %v956
      %v1025 = vadd.f32 %v790, %v957
      %v1026 = vadd.f32 %v791, %v958
      %v1027 = vadd.f32 %v792, %v959
      %v1028 = vadd.f32 %v960, 0.0
      %v1029 = vadd.f32 %v961, 0.0
      %v1030 = vadd.f32 %v793, 0.0
      %v1031 = vadd.f32 %v794, 0.0
      %v1032 = vadd.f32 %v795, %v962
      %v1033 = vadd.f32 %v796, %v963
      %v1034 = vadd.f32 %v797, %v964
      %v1035 = vadd.f32 %v798, %v965
      %v1036 = vadd.f32 %v799, %v966
      %v1037 = vadd.f32 %v800, %v967
      %v1038 = vadd.f32 %v801, %v968
      %v1039 = vadd.f32 %v802, %v969
      %v1040 = vadd.f32 %v803, %v970
      %v1041 = vadd.f32 %v804, %v971
      %v1042 = vadd.f32 %v805, %v972
      %v1043 = vadd.f32 %v806, %v973
      %v1044 = vadd.f32 %v807, %v974
      %v1045 = vadd.f32 %v808, %v975
      %v1046 = vadd.f32 %v976, 0.0
      %v1047 = vadd.f32 %v977, 0.0
      %v1048 = vadd.f32 %v809, 0.0
      %v1049 = vadd.f32 %v810, 0.0
      %v1050 = vadd.f32 %v811, %v978
      %v1051 = vadd.f32 %v812, %v979
      %v1052 = vadd.f32 %v813, %v980
      %v1053 = vadd.f32 %v814, %v981
      %v1054 = vadd.f32 %v815, %v982
      %v1055 = vadd.f32 %v816, %v983
      %v1056 = vadd.f32 %v817, %v984
      %v1057 = vadd.f32 %v818, %v985
      %v1058 = vadd.f32 %v819, %v986
      %v1059 = vadd.f32 %v820, %v987
      %v1060 = vadd.f32 %v821, %v988
      %v1061 = vadd.f32 %v822, %v989
      %v1062 = vadd.f32 %v823, %v990
      %v1063 = vadd.f32 %v824, %v991
      %v1064 = vadd.f32 %v992, 0.0
      %v1065 = vadd.f32 %v993, 0.0
      %v1066 = vlaneseq
      %v1067 = vshrl.u32 %v1066, 7
      %v1068 = vsub.s32 4, %v1067
      %v1069 = vrot.slane %v203, %v1068
      %v1070 = vmul.f32 %v495, %v1069
      %v1071 = vmul.f32 %v1069, 0.0
      %v1072 = vmul.f32 %v496, %v1069
      %v1073 = vmul.f32 %v497, %v1069
      %v1074 = vmul.f32 %v498, %v1069
      %v1075 = vmul.f32 %v499, %v1069
      %v1076 = vmul.f32 %v500, %v1069
      %v1077 = vmul.f32 %v501, %v1069
      %v1078 = vmul.f32 %v502, %v1069
      %v1079 = vmul.f32 %v503, %v1069
      %v1080 = vmul.f32 %v504, %v1069
      %v1081 = vmul.f32 %v505, %v1069
      %v1082 = vmul.f32 %v506, %v1069
      %v1083 = vmul.f32 %v507, %v1069
      %v1084 = vmul.f32 %v508, %v1069
      %v1085 = vmul.f32 %v509, %v1069
      %v1086 = vmul.f32 %v510, %v1069
      %v1087 = vmul.f32 %v511, %v1069
      %v1088 = vmul.f32 %v512, %v1069
      %v1089 = vmul.f32 %v513, %v1069
      %v1090 = vmul.f32 %v514, %v1069
      %v1091 = vmul.f32 %v515, %v1069
      %v1092 = vmul.f32 %v516, %v1069
      %v1093 = vmul.f32 %v517, %v1069
      %v1094 = vmul.f32 %v518, %v1069
      %v1095 = vmul.f32 %v519, %v1069
      %v1096 = vmul.f32 %v520, %v1069
      %v1097 = vmul.f32 %v521, %v1069
      %v1098 = vmul.f32 %v522, %v1069
      %v1099 = vmul.f32 %v523, %v1069
      %v1100 = vmul.f32 %v524, %v1069
      %v1101 = vmul.f32 %v525, %v1069
      %v1102 = vmul.f32 %v526, %v1069
      %v1103 = vlaneseq
      %v1104 = vshrl.u32 %v1103, 7
      %v1105 = vsub.s32 5, %v1104
      %v1106 = vrot.slane %v203, %v1105
      %v1107 = vmul.f32 %v624, %v1106
      %v1108 = vmul.f32 %v559, %v1106
      %v1109 = vmul.f32 %v625, %v1106
      %v1110 = vmul.f32 %v560, %v1106
      %v1111 = vmul.f32 %v626, %v1106
      %v1112 = vmul.f32 %v561, %v1106
      %v1113 = vmul.f32 %v627, %v1106
      %v1114 = vmul.f32 %v562, %v1106
      %v1115 = vmul.f32 %v628, %v1106
      %v1116 = vmul.f32 %v563, %v1106
      %v1117 = vmul.f32 %v629, %v1106
      %v1118 = vmul.f32 %v564, %v1106
      %v1119 = vmul.f32 %v630, %v1106
      %v1120 = vmul.f32 %v565, %v1106
      %v1121 = vmul.f32 %v631, %v1106
      %v1122 = vmul.f32 %v566, %v1106
      %v1123 = vmul.f32 %v632, %v1106
      %v1124 = vmul.f32 %v567, %v1106
      %v1125 = vmul.f32 %v633, %v1106
      %v1126 = vmul.f32 %v568, %v1106
      %v1127 = vmul.f32 %v634, %v1106
      %v1128 = vmul.f32 %v569, %v1106
      %v1129 = vmul.f32 %v635, %v1106
      %v1130 = vmul.f32 %v570, %v1106
      %v1131 = vmul.f32 %v636, %v1106
      %v1132 = vmul.f32 %v571, %v1106
      %v1133 = vmul.f32 %v637, %v1106
      %v1134 = vmul.f32 %v572, %v1106
      %v1135 = vmul.f32 %v638, %v1106
      %v1136 = vmul.f32 %v573, %v1106
      %v1137 = vmul.f32 %v639, %v1106
      %v1138 = vmul.f32 %v574, %v1106
      %v1139 = vmul.f32 %v640, %v1106
      %v1140 = vmul.f32 %v575, %v1106
      %v1141 = vmul.f32 %v641, %v1106
      %v1142 = vmul.f32 %v576, %v1106
      %v1143 = vmul.f32 %v642, %v1106
      %v1144 = vmul.f32 %v577, %v1106
      %v1145 = vmul.f32 %v643, %v1106
      %v1146 = vmul.f32 %v578, %v1106
      %v1147 = vmul.f32 %v644, %v1106
      %v1148 = vmul.f32 %v579, %v1106
      %v1149 = vmul.f32 %v645, %v1106
      %v1150 = vmul.f32 %v580, %v1106
      %v1151 = vmul.f32 %v646, %v1106
      %v1152 = vmul.f32 %v581, %v1106
      %v1153 = vmul.f32 %v647, %v1106
      %v1154 = vmul.f32 %v582, %v1106
      %v1155 = vmul.f32 %v648, %v1106
      %v1156 = vmul.f32 %v583, %v1106
      %v1157 = vmul.f32 %v649, %v1106
      %v1158 = vmul.f32 %v584, %v1106
      %v1159 = vmul.f32 %v650, %v1106
      %v1160 = vmul.f32 %v585, %v1106
      %v1161 = vmul.f32 %v651, %v1106
      %v1162 = vmul.f32 %v586, %v1106
      %v1163 = vmul.f32 %v652, %v1106
      %v1164 = vmul.f32 %v587, %v1106
      %v1165 = vmul.f32 %v653, %v1106
      %v1166 = vmul.f32 %v588, %v1106
      %v1167 = vmul.f32 %v654, %v1106
      %v1168 = vmul.f32 %v589, %v1106
      %v1169 = vmul.f32 %v655, %v1106
      %v1170 = vmul.f32 %v590, %v1106
      %v1171 = vadd.f32 %v1070, %v1107
      %v1172 = vadd.f32 %v1071, %v1108
      %v1173 = vadd.f32 %v1072, %v1109
      %v1174 = vadd.f32 %v1071, %v1110
      %v1175 = vadd.f32 %v1073, %v1111
      %v1176 = vadd.f32 %v1071, %v1112
      %v1177 = vadd.f32 %v1074, %v1113
      %v1178 = vadd.f32 %v1071, %v1114
      %v1179 = vadd.f32 %v1075, %v1115
      %v1180 = vadd.f32 %v1071, %v1116
      %v1181 = vadd.f32 %v1076, %v1117
      %v1182 = vadd.f32 %v1071, %v1118
      %v1183 = vadd.f32 %v1077, %v1119
      %v1184 = vadd.f32 %v1071, %v1120
      %v1185 = vadd.f32 %v1078, %v1121
      %v1186 = vadd.f32 %v1071, %v1122
      %v1187 = vadd.f32 %v1079, %v1123
      %v1188 = vadd.f32 %v1071, %v1124
      %v1189 = vadd.f32 %v1080, %v1125
      %v1190 = vadd.f32 %v1071, %v1126
      %v1191 = vadd.f32 %v1081, %v1127
      %v1192 = vadd.f32 %v1071, %v1128
      %v1193 = vadd.f32 %v1082, %v1129
      %v1194 = vadd.f32 %v1071, %v1130
      %v1195 = vadd.f32 %v1083, %v1131
      %v1196 = vadd.f32 %v1071, %v1132
      %v1197 = vadd.f32 %v1084, %v1133
      %v1198 = vadd.f32 %v1071, %v1134
      %v1199 = vadd.f32 %v1085, %v1135
      %v1200 = vadd.f32 %v1071, %v1136
      %v1201 = vadd.f32 %v1086, %v1137
      %v1202 = vadd.f32 %v1071, %v1138
      %v1203 = vadd.f32 %v1087, %v1139
      %v1204 = vadd.f32 %v1071, %v1140
      %v1205 = vadd.f32 %v1088, %v1141
      %v1206 = vadd.f32 %v1071, %v1142
      %v1207 = vadd.f32 %v1089, %v1143
      %v1208 = vadd.f32 %v1071, %v1144
      %v1209 = vadd.f32 %v1090, %v1145
      %v1210 = vadd.f32 %v1071, %v1146
      %v1211 = vadd.f32 %v1091, %v1147
      %v1212 = vadd.f32 %v1071, %v1148
      %v1213 = vadd.f32 %v1092, %v1149
      %v1214 = vadd.f32 %v1071, %v1150
      %v1215 = vadd.f32 %v1093, %v1151
      %v1216 = vadd.f32 %v1071, %v1152
      %v1217 = vadd.f32 %v1094, %v1153
      %v1218 = vadd.f32 %v1071, %v1154
      %v1219 = vadd.f32 %v1095, %v1155
      %v1220 = vadd.f32 %v1071, %v1156
      %v1221 = vadd.f32 %v1096, %v1157
      %v1222 = vadd.f32 %v1071, %v1158
      %v1223 = vadd.f32 %v1097, %v1159
      %v1224 = vadd.f32 %v1071, %v1160
      %v1225 = vadd.f32 %v1098, %v1161
      %v1226 = vadd.f32 %v1071, %v1162
      %v1227 = vadd.f32 %v1099, %v1163
      %v1228 = vadd.f32 %v1071, %v1164
      %v1229 = vadd.f32 %v1100, %v1165
      %v1230 = vadd.f32 %v1071, %v1166
      %v1231 = vadd.f32 %v1101, %v1167
      %v1232 = vadd.f32 %v1071, %v1168
      %v1233 = vadd.f32 %v1102, %v1169
      %v1234 = vadd.f32 %v1071, %v1170
      %v1235 = vlaneseq
      %v1236 = vshrl.u32 %v1235, 7
      %v1237 = vsub.s32 6, %v1236
      %v1238 = vrot.slane %v203, %v1237
      %v1239 = vmul.f32 %v495, %v1238
      %v1240 = vmul.f32 %v1238, 0.0
      %v1241 = vmul.f32 %v496, %v1238
      %v1242 = vmul.f32 %v497, %v1238
      %v1243 = vmul.f32 %v498, %v1238
      %v1244 = vmul.f32 %v499, %v1238
      %v1245 = vmul.f32 %v500, %v1238
      %v1246 = vmul.f32 %v501, %v1238
      %v1247 = vmul.f32 %v502, %v1238
      %v1248 = vmul.f32 %v503, %v1238
      %v1249 = vmul.f32 %v504, %v1238
      %v1250 = vmul.f32 %v505, %v1238
      %v1251 = vmul.f32 %v506, %v1238
      %v1252 = vmul.f32 %v507, %v1238
      %v1253 = vmul.f32 %v508, %v1238
      %v1254 = vmul.f32 %v509, %v1238
      %v1255 = vmul.f32 %v510, %v1238
      %v1256 = vmul.f32 %v511, %v1238
      %v1257 = vmul.f32 %v512, %v1238
      %v1258 = vmul.f32 %v513, %v1238
      %v1259 = vmul.f32 %v514, %v1238
      %v1260 = vmul.f32 %v515, %v1238
      %v1261 = vmul.f32 %v516, %v1238
      %v1262 = vmul.f32 %v517, %v1238
      %v1263 = vmul.f32 %v518, %v1238
      %v1264 = vmul.f32 %v519, %v1238
      %v1265 = vmul.f32 %v520, %v1238
      %v1266 = vmul.f32 %v521, %v1238
      %v1267 = vmul.f32 %v522, %v1238
      %v1268 = vmul.f32 %v523, %v1238
      %v1269 = vmul.f32 %v524, %v1238
      %v1270 = vmul.f32 %v525, %v1238
      %v1271 = vmul.f32 %v526, %v1238
      %v1272 = vlaneseq
      %v1273 = vshrl.u32 %v1272, 7
      %v1274 = vsub.s32 7, %v1273
      %v1275 = vrot.slane %v203, %v1274
      %v1276 = vmul.f32 %v624, %v1275
      %v1277 = vmul.f32 %v559, %v1275
      %v1278 = vmul.f32 %v625, %v1275
      %v1279 = vmul.f32 %v560, %v1275
      %v1280 = vmul.f32 %v626, %v1275
      %v1281 = vmul.f32 %v561, %v1275
      %v1282 = vmul.f32 %v627, %v1275
      %v1283 = vmul.f32 %v562, %v1275
      %v1284 = vmul.f32 %v628, %v1275
      %v1285 = vmul.f32 %v563, %v1275
      %v1286 = vmul.f32 %v629, %v1275
      %v1287 = vmul.f32 %v564, %v1275
      %v1288 = vmul.f32 %v630, %v1275
      %v1289 = vmul.f32 %v565, %v1275
      %v1290 = vmul.f32 %v631, %v1275
      %v1291 = vmul.f32 %v566, %v1275
      %v1292 = vmul.f32 %v632, %v1275
      %v1293 = vmul.f32 %v567, %v1275
      %v1294 = vmul.f32 %v633, %v1275
      %v1295 = vmul.f32 %v568, %v1275
      %v1296 = vmul.f32 %v634, %v1275
      %v1297 = vmul.f32 %v569, %v1275
      %v1298 = vmul.f32 %v635, %v1275
      %v1299 = vmul.f32 %v570, %v1275
      %v1300 = vmul.f32 %v636, %v1275
      %v1301 = vmul.f32 %v571, %v1275
      %v1302 = vmul.f32 %v637, %v1275
      %v1303 = vmul.f32 %v572, %v1275
      %v1304 = vmul.f32 %v638, %v1275
      %v1305 = vmul.f32 %v573, %v1275
      %v1306 = vmul.f32 %v639, %v1275
      %v1307 = vmul.f32 %v574, %v1275
      %v1308 = vmul.f32 %v640, %v1275
      %v1309 = vmul.f32 %v575, %v1275
      %v1310 = vmul.f32 %v641, %v1275
      %v1311 = vmul.f32 %v576, %v1275
      %v1312 = vmul.f32 %v642, %v1275
      %v1313 = vmul.f32 %v577, %v1275
      %v1314 = vmul.f32 %v643, %v1275
      %v1315 = vmul.f32 %v578, %v1275
      %v1316 = vmul.f32 %v644, %v1275
      %v1317 = vmul.f32 %v579, %v1275
      %v1318 = vmul.f32 %v645, %v1275
      %v1319 = vmul.f32 %v580, %v1275
      %v1320 = vmul.f32 %v646, %v1275
      %v1321 = vmul.f32 %v581, %v1275
      %v1322 = vmul.f32 %v647, %v1275
      %v1323 = vmul.f32 %v582, %v1275
      %v1324 = vmul.f32 %v648, %v1275
      %v1325 = vmul.f32 %v583, %v1275
      %v1326 = vmul.f32 %v649, %v1275
      %v1327 = vmul.f32 %v584, %v1275
      %v1328 = vmul.f32 %v650, %v1275
      %v1329 = vmul.f32 %v585, %v1275
      %v1330 = vmul.f32 %v651, %v1275
      %v1331 = vmul.f32 %v586, %v1275
      %v1332 = vmul.f32 %v652, %v1275
      %v1333 = vmul.f32 %v587, %v1275
      %v1334 = vmul.f32 %v653, %v1275
      %v1335 = vmul.f32 %v588, %v1275
      %v1336 = vmul.f32 %v654, %v1275
      %v1337 = vmul.f32 %v589, %v1275
      %v1338 = vmul.f32 %v655, %v1275
      %v1339 = vmul.f32 %v590, %v1275
      %v1340 = vadd.f32 %v1239, %v1276
      %v1341 = vadd.f32 %v1240, %v1277
      %v1342 = vadd.f32 %v1241, %v1278
      %v1343 = vadd.f32 %v1240, %v1279
      %v1344 = vadd.f32 %v1242, %v1280
      %v1345 = vadd.f32 %v1240, %v1281
      %v1346 = vadd.f32 %v1243, %v1282
      %v1347 = vadd.f32 %v1240, %v1283
      %v1348 = vadd.f32 %v1244, %v1284
      %v1349 = vadd.f32 %v1240, %v1285
      %v1350 = vadd.f32 %v1245, %v1286
      %v1351 = vadd.f32 %v1240, %v1287
      %v1352 = vadd.f32 %v1246, %v1288
      %v1353 = vadd.f32 %v1240, %v1289
      %v1354 = vadd.f32 %v1247, %v1290
      %v1355 = vadd.f32 %v1240, %v1291
      %v1356 = vadd.f32 %v1248, %v1292
      %v1357 = vadd.f32 %v1240, %v1293
      %v1358 = vadd.f32 %v1249, %v1294
      %v1359 = vadd.f32 %v1240, %v1295
      %v1360 = vadd.f32 %v1250, %v1296
      %v1361 = vadd.f32 %v1240, %v1297
      %v1362 = vadd.f32 %v1251, %v1298
      %v1363 = vadd.f32 %v1240, %v1299
      %v1364 = vadd.f32 %v1252, %v1300
      %v1365 = vadd.f32 %v1240, %v1301
      %v1366 = vadd.f32 %v1253, %v1302
      %v1367 = vadd.f32 %v1240, %v1303
      %v1368 = vadd.f32 %v1254, %v1304
      %v1369 = vadd.f32 %v1240, %v1305
      %v1370 = vadd.f32 %v1255, %v1306
      %v1371 = vadd.f32 %v1240, %v1307
      %v1372 = vadd.f32 %v1256, %v1308
      %v1373 = vadd.f32 %v1240, %v1309
      %v1374 = vadd.f32 %v1257, %v1310
      %v1375 = vadd.f32 %v1240, %v1311
      %v1376 = vadd.f32 %v1258, %v1312
      %v1377 = vadd.f32 %v1240, %v1313
      %v1378 = vadd.f32 %v1259, %v1314
      %v1379 = vadd.f32 %v1240, %v1315
      %v1380 = vadd.f32 %v1260, %v1316
      %v1381 = vadd.f32 %v1240, %v1317
      %v1382 = vadd.f32 %v1261, %v1318
      %v1383 = vadd.f32 %v1240, %v1319
      %v1384 = vadd.f32 %v1262, %v1320
      %v1385 = vadd.f32 %v1240, %v1321
      %v1386 = vadd.f32 %v1263, %v1322
      %v1387 = vadd.f32 %v1240, %v1323
      %v1388 = vadd.f32 %v1264, %v1324
      %v1389 = vadd.f32 %v1240, %v1325
      %v1390 = vadd.f32 %v1265, %v1326
      %v1391 = vadd.f32 %v1240, %v1327
      %v1392 = vadd.f32 %v1266, %v1328
      %v1393 = vadd.f32 %v1240, %v1329
      %v1394 = vadd.f32 %v1267, %v1330
      %v1395 = vadd.f32 %v1240, %v1331
      %v1396 = vadd.f32 %v1268, %v1332
      %v1397 = vadd.f32 %v1240, %v1333
      %v1398 = vadd.f32 %v1269, %v1334
      %v1399 = vadd.f32 %v1240, %v1335
      %v1400 = vadd.f32 %v1270, %v1336
      %v1401 = vadd.f32 %v1240, %v1337
      %v1402 = vadd.f32 %v1271, %v1338
      %v1403 = vadd.f32 %v1240, %v1339
      %v1404 = vadd.f32 %v1171, 0.0
      %v1405 = vadd.f32 %v1172, 0.0
      %v1406 = vadd.f32 %v1173, %v1340
      %v1407 = vadd.f32 %v1174, %v1341
      %v1408 = vadd.f32 %v1175, %v1342
      %v1409 = vadd.f32 %v1176, %v1343
      %v1410 = vadd.f32 %v1177, %v1344
      %v1411 = vadd.f32 %v1178, %v1345
      %v1412 = vadd.f32 %v1179, %v1346
      %v1413 = vadd.f32 %v1180, %v1347
      %v1414 = vadd.f32 %v1181, %v1348
      %v1415 = vadd.f32 %v1182, %v1349
      %v1416 = vadd.f32 %v1183, %v1350
      %v1417 = vadd.f32 %v1184, %v1351
      %v1418 = vadd.f32 %v1185, %v1352
      %v1419 = vadd.f32 %v1186, %v1353
      %v1420 = vadd.f32 %v1354, 0.0
      %v1421 = vadd.f32 %v1355, 0.0
      %v1422 = vadd.f32 %v1187, 0.0
      %v1423 = vadd.f32 %v1188, 0.0
      %v1424 = vadd.f32 %v1189, %v1356
      %v1425 = vadd.f32 %v1190, %v1357
      %v1426 = vadd.f32 %v1191, %v1358
      %v1427 = vadd.f32 %v1192, %v1359
      %v1428 = vadd.f32 %v1193, %v1360
      %v1429 = vadd.f32 %v1194, %v1361
      %v1430 = vadd.f32 %v1195, %v1362
      %v1431 = vadd.f32 %v1196, %v1363
      %v1432 = vadd.f32 %v1197, %v1364
      %v1433 = vadd.f32 %v1198, %v1365
      %v1434 = vadd.f32 %v1199, %v1366
      %v1435 = vadd.f32 %v1200, %v1367
      %v1436 = vadd.f32 %v1201, %v1368
      %v1437 = vadd.f32 %v1202, %v1369
      %v1438 = vadd.f32 %v1370, 0.0
      %v1439 = vadd.f32 %v1371, 0.0
      %v1440 = vadd.f32 %v1203, 0.0
      %v1441 = vadd.f32 %v1204, 0.0
      %v1442 = vadd.f32 %v1205, %v1372
      %v1443 = vadd.f32 %v1206, %v1373
      %v1444 = vadd.f32 %v1207, %v1374
      %v1445 = vadd.f32 %v1208, %v1375
      %v1446 = vadd.f32 %v1209, %v1376
      %v1447 = vadd.f32 %v1210, %v1377
      %v1448 = vadd.f32 %v1211, %v1378
      %v1449 = vadd.f32 %v1212, %v1379
      %v1450 = vadd.f32 %v1213, %v1380
      %v1451 = vadd.f32 %v1214, %v1381
      %v1452 = vadd.f32 %v1215, %v1382
      %v1453 = vadd.f32 %v1216, %v1383
      %v1454 = vadd.f32 %v1217, %v1384
      %v1455 = vadd.f32 %v1218, %v1385
      %v1456 = vadd.f32 %v1386, 0.0
      %v1457 = vadd.f32 %v1387, 0.0
      %v1458 = vadd.f32 %v1219, 0.0
      %v1459 = vadd.f32 %v1220, 0.0
      %v1460 = vadd.f32 %v1221, %v1388
      %v1461 = vadd.f32 %v1222, %v1389
      %v1462 = vadd.f32 %v1223, %v1390
      %v1463 = vadd.f32 %v1224, %v1391
      %v1464 = vadd.f32 %v1225, %v1392
      %v1465 = vadd.f32 %v1226, %v1393
      %v1466 = vadd.f32 %v1227, %v1394
      %v1467 = vadd.f32 %v1228, %v1395
      %v1468 = vadd.f32 %v1229, %v1396
      %v1469 = vadd.f32 %v1230, %v1397
      %v1470 = vadd.f32 %v1231, %v1398
      %v1471 = vadd.f32 %v1232, %v1399
      %v1472 = vadd.f32 %v1233, %v1400
      %v1473 = vadd.f32 %v1234, %v1401
      %v1474 = vadd.f32 %v1402, 0.0
      %v1475 = vadd.f32 %v1403, 0.0
      %v1476 = vadd.f32 %v994, 0.0
      %v1477 = vadd.f32 %v995, 0.0
      %v1478 = vadd.f32 %v996, 0.0
      %v1479 = vadd.f32 %v997, 0.0
      %v1480 = vadd.f32 %v998, 0.0
      %v1481 = vadd.f32 %v999, 0.0
      %v1482 = vadd.f32 %v1000, 0.0
      %v1483 = vadd.f32 %v1001, 0.0
      %v1484 = vadd.f32 %v1002, 0.0
      %v1485 = vadd.f32 %v1003, 0.0
      %v1486 = vadd.f32 %v1004, 0.0
      %v1487 = vadd.f32 %v1005, 0.0
      %v1488 = vadd.f32 %v1006, 0.0
      %v1489 = vadd.f32 %v1007, 0.0
      %v1490 = vadd.f32 %v1008, 0.0
      %v1491 = vadd.f32 %v1009, 0.0
      %v1492 = vadd.f32 %v1010, 0.0
      %v1493 = vadd.f32 %v1011, 0.0
      %v1494 = vadd.f32 %v1012, %v1404
      %v1495 = vadd.f32 %v1013, %v1405
      %v1496 = vadd.f32 %v1014, %v1406
      %v1497 = vadd.f32 %v1015, %v1407
      %v1498 = vadd.f32 %v1016, %v1408
      %v1499 = vadd.f32 %v1017, %v1409
      %v1500 = vadd.f32 %v1018, %v1410
      %v1501 = vadd.f32 %v1019, %v1411
      %v1502 = vadd.f32 %v1020, %v1412
      %v1503 = vadd.f32 %v1021, %v1413
      %v1504 = vadd.f32 %v1022, %v1414
      %v1505 = vadd.f32 %v1023, %v1415
      %v1506 = vadd.f32 %v1024, %v1416
      %v1507 = vadd.f32 %v1025, %v1417
      %v1508 = vadd.f32 %v1026, %v1418
      %v1509 = vadd.f32 %v1027, %v1419
      %v1510 = vadd.f32 %v1028, %v1420
      %v1511 = vadd.f32 %v1029, %v1421
      %v1512 = vadd.f32 %v1030, %v1422
      %v1513 = vadd.f32 %v1031, %v1423
      %v1514 = vadd.f32 %v1032, %v1424
      %v1515 = vadd.f32 %v1033, %v1425
      %v1516 = vadd.f32 %v1034, %v1426
      %v1517 = vadd.f32 %v1035, %v1427
      %v1518 = vadd.f32 %v1036, %v1428
      %v1519 = vadd.f32 %v1037, %v1429
      %v1520 = vadd.f32 %v1038, %v1430
      %v1521 = vadd.f32 %v1039, %v1431
      %v1522 = vadd.f32 %v1040, %v1432
      %v1523 = vadd.f32 %v1041, %v1433
      %v1524 = vadd.f32 %v1042, %v1434
      %v1525 = vadd.f32 %v1043, %v1435
      %v1526 = vadd.f32 %v1044, %v1436
      %v1527 = vadd.f32 %v1045, %v1437
      %v1528 = vadd.f32 %v1046, %v1438
      %v1529 = vadd.f32 %v1047, %v1439
      %v1530 = vadd.f32 %v1048, %v1440
      %v1531 = vadd.f32 %v1049, %v1441
      %v1532 = vadd.f32 %v1050, %v1442
      %v1533 = vadd.f32 %v1051, %v1443
      %v1534 = vadd.f32 %v1052, %v1444
      %v1535 = vadd.f32 %v1053, %v1445
      %v1536 = vadd.f32 %v1054, %v1446
      %v1537 = vadd.f32 %v1055, %v1447
      %v1538 = vadd.f32 %v1056, %v1448
      %v1539 = vadd.f32 %v1057, %v1449
      %v1540 = vadd.f32 %v1058, %v1450
      %v1541 = vadd.f32 %v1059, %v1451
      %v1542 = vadd.f32 %v1060, %v1452
      %v1543 = vadd.f32 %v1061, %v1453
      %v1544 = vadd.f32 %v1062, %v1454
      %v1545 = vadd.f32 %v1063, %v1455
      %v1546 = vadd.f32 %v1064, %v1456
      %v1547 = vadd.f32 %v1065, %v1457
      %v1548 = vadd.f32 %v1458, 0.0
      %v1549 = vadd.f32 %v1459, 0.0
      %v1550 = vadd.f32 %v1460, 0.0
      %v1551 = vadd.f32 %v1461, 0.0
      %v1552 = vadd.f32 %v1462, 0.0
      %v1553 = vadd.f32 %v1463, 0.0
      %v1554 = vadd.f32 %v1464, 0.0
      %v1555 = vadd.f32 %v1465, 0.0
      %v1556 = vadd.f32 %v1466, 0.0
      %v1557 = vadd.f32 %v1467, 0.0
      %v1558 = vadd.f32 %v1468, 0.0
      %v1559 = vadd.f32 %v1469, 0.0
      %v1560 = vadd.f32 %v1470, 0.0
      %v1561 = vadd.f32 %v1471, 0.0
      %v1562 = vadd.f32 %v1472, 0.0
      %v1563 = vadd.f32 %v1473, 0.0
      %v1564 = vadd.f32 %v1474, 0.0
      %v1565 = vadd.f32 %v1475, 0.0
      %v1566 = vld [vmem:[%s2] sm:$0x1]
      %v1568 = vlaneseq
      %v1569 = vshrl.u32 %v1568, 7
      %v1570 = vsub.s32 0, %v1569
      %v1571 = vrot.slane %v1566, %v1570
      %v1573 = vadd.f32 %v1476, %v1571
      %v1574 = vadd.f32 %v1477, %v1571
      %v1575 = vadd.f32 %v1478, %v1571
      %v1576 = vadd.f32 %v1479, %v1571
      %v1577 = vadd.f32 %v1480, %v1571
      %v1578 = vadd.f32 %v1481, %v1571
      %v1579 = vadd.f32 %v1482, %v1571
      %v1580 = vadd.f32 %v1483, %v1571
      %v1581 = vadd.f32 %v1484, %v1571
      %v1582 = vadd.f32 %v1485, %v1571
      %v1583 = vadd.f32 %v1486, %v1571
      %v1584 = vadd.f32 %v1487, %v1571
      %v1585 = vadd.f32 %v1488, %v1571
      %v1586 = vadd.f32 %v1489, %v1571
      %v1587 = vadd.f32 %v1490, %v1571
      %v1588 = vadd.f32 %v1491, %v1571
      %v1589 = vadd.f32 %v1492, %v1571
      %v1590 = vadd.f32 %v1493, %v1571
      %v1591 = vadd.f32 %v1494, %v1571
      %v1592 = vadd.f32 %v1495, %v1571
      %v1593 = vadd.f32 %v1496, %v1571
      %v1594 = vadd.f32 %v1497, %v1571
      %v1595 = vadd.f32 %v1498, %v1571
      %v1596 = vadd.f32 %v1499, %v1571
      %v1597 = vadd.f32 %v1500, %v1571
      %v1598 = vadd.f32 %v1501, %v1571
      %v1599 = vadd.f32 %v1502, %v1571
      %v1600 = vadd.f32 %v1503, %v1571
      %v1601 = vadd.f32 %v1504, %v1571
      %v1602 = vadd.f32 %v1505, %v1571
      %v1603 = vadd.f32 %v1506, %v1571
      %v1604 = vadd.f32 %v1507, %v1571
      %v1605 = vadd.f32 %v1508, %v1571
      %v1606 = vadd.f32 %v1509, %v1571
      %v1607 = vadd.f32 %v1510, %v1571
      %v1608 = vadd.f32 %v1511, %v1571
      %v1609 = vadd.f32 %v1512, %v1571
      %v1610 = vadd.f32 %v1513, %v1571
      %v1611 = vadd.f32 %v1514, %v1571
      %v1612 = vadd.f32 %v1515, %v1571
      %v1613 = vadd.f32 %v1516, %v1571
      %v1614 = vadd.f32 %v1517, %v1571
      %v1615 = vadd.f32 %v1518, %v1571
      %v1616 = vadd.f32 %v1519, %v1571
      %v1617 = vadd.f32 %v1520, %v1571
      %v1618 = vadd.f32 %v1521, %v1571
      %v1619 = vadd.f32 %v1522, %v1571
      %v1620 = vadd.f32 %v1523, %v1571
      %v1621 = vadd.f32 %v1524, %v1571
      %v1622 = vadd.f32 %v1525, %v1571
      %v1623 = vadd.f32 %v1526, %v1571
      %v1624 = vadd.f32 %v1527, %v1571
      %v1625 = vadd.f32 %v1528, %v1571
      %v1626 = vadd.f32 %v1529, %v1571
      %v1627 = vadd.f32 %v1530, %v1571
      %v1628 = vadd.f32 %v1531, %v1571
      %v1629 = vadd.f32 %v1532, %v1571
      %v1630 = vadd.f32 %v1533, %v1571
      %v1631 = vadd.f32 %v1534, %v1571
      %v1632 = vadd.f32 %v1535, %v1571
      %v1633 = vadd.f32 %v1536, %v1571
      %v1634 = vadd.f32 %v1537, %v1571
      %v1635 = vadd.f32 %v1538, %v1571
      %v1636 = vadd.f32 %v1539, %v1571
      %v1637 = vadd.f32 %v1540, %v1571
      %v1638 = vadd.f32 %v1541, %v1571
      %v1639 = vadd.f32 %v1542, %v1571
      %v1640 = vadd.f32 %v1543, %v1571
      %v1641 = vadd.f32 %v1544, %v1571
      %v1642 = vadd.f32 %v1545, %v1571
      %v1643 = vadd.f32 %v1546, %v1571
      %v1644 = vadd.f32 %v1547, %v1571
      %v1645 = vadd.f32 %v1548, %v1571
      %v1646 = vadd.f32 %v1549, %v1571
      %v1647 = vadd.f32 %v1550, %v1571
      %v1648 = vadd.f32 %v1551, %v1571
      %v1649 = vadd.f32 %v1552, %v1571
      %v1650 = vadd.f32 %v1553, %v1571
      %v1651 = vadd.f32 %v1554, %v1571
      %v1652 = vadd.f32 %v1555, %v1571
      %v1653 = vadd.f32 %v1556, %v1571
      %v1654 = vadd.f32 %v1557, %v1571
      %v1655 = vadd.f32 %v1558, %v1571
      %v1656 = vadd.f32 %v1559, %v1571
      %v1657 = vadd.f32 %v1560, %v1571
      %v1658 = vadd.f32 %v1561, %v1571
      %v1659 = vadd.f32 %v1562, %v1571
      %v1660 = vadd.f32 %v1563, %v1571
      %v1661 = vadd.f32 %v1564, %v1571
      %v1662 = vadd.f32 %v1565, %v1571
      %1663 = vst [vmem:[%s170] sm:$0xff] %v1573
      %1664 = vst [vmem:[%s170 + $0x8] sm:$0x1] %v1574
      %1665 = vst [vmem:[%s170 + $0x10] sm:$0xff] %v1575
      %1666 = vst [vmem:[%s170 + $0x18] sm:$0x1] %v1576
      %1667 = vst [vmem:[%s170 + $0x20] sm:$0xff] %v1577
      %1668 = vst [vmem:[%s170 + $0x28] sm:$0x1] %v1578
      %1669 = vst [vmem:[%s170 + $0x30] sm:$0xff] %v1579
      %1670 = vst [vmem:[%s170 + $0x38] sm:$0x1] %v1580
      %1671 = vst [vmem:[%s170 + $0x40] sm:$0xff] %v1581
      %1672 = vst [vmem:[%s170 + $0x48] sm:$0x1] %v1582
      %1673 = vst [vmem:[%s170 + $0x50] sm:$0xff] %v1583
      %1674 = vst [vmem:[%s170 + $0x58] sm:$0x1] %v1584
      %1675 = vst [vmem:[%s170 + $0x60] sm:$0xff] %v1585
      %1676 = vst [vmem:[%s170 + $0x68] sm:$0x1] %v1586
      %1677 = vst [vmem:[%s170 + $0x70] sm:$0xff] %v1587
      %1678 = vst [vmem:[%s170 + $0x78] sm:$0x1] %v1588
      %1679 = vst [vmem:[%s170 + $0x80] sm:$0xff] %v1589
      %1680 = vst [vmem:[%s170 + $0x88] sm:$0x1] %v1590
      %1681 = vst [vmem:[%s170 + $0x90] sm:$0xff] %v1591
      %1682 = vst [vmem:[%s170 + $0x98] sm:$0x1] %v1592
      %1683 = vst [vmem:[%s170 + $0xa0] sm:$0xff] %v1593
      %1684 = vst [vmem:[%s170 + $0xa8] sm:$0x1] %v1594
      %1685 = vst [vmem:[%s170 + $0xb0] sm:$0xff] %v1595
      %1686 = vst [vmem:[%s170 + $0xb8] sm:$0x1] %v1596
      %1687 = vst [vmem:[%s170 + $0xc0] sm:$0xff] %v1597
      %1688 = vst [vmem:[%s170 + $0xc8] sm:$0x1] %v1598
      %1689 = vst [vmem:[%s170 + $0xd0] sm:$0xff] %v1599
      %1690 = vst [vmem:[%s170 + $0xd8] sm:$0x1] %v1600
      %1691 = vst [vmem:[%s170 + $0xe0] sm:$0xff] %v1601
      %1692 = vst [vmem:[%s170 + $0xe8] sm:$0x1] %v1602
      %1693 = vst [vmem:[%s170 + $0xf0] sm:$0xff] %v1603
      %1694 = vst [vmem:[%s170 + $0xf8] sm:$0x1] %v1604
      %1695 = vst [vmem:[%s170 + $0x100] sm:$0xff] %v1605
      %1696 = vst [vmem:[%s170 + $0x108] sm:$0x1] %v1606
      %1697 = vst [vmem:[%s170 + $0x110] sm:$0xff] %v1607
      %1698 = vst [vmem:[%s170 + $0x118] sm:$0x1] %v1608
      %1699 = vst [vmem:[%s170 + $0x120] sm:$0xff] %v1609
      %1700 = vst [vmem:[%s170 + $0x128] sm:$0x1] %v1610
      %1701 = vst [vmem:[%s170 + $0x130] sm:$0xff] %v1611
      %1702 = vst [vmem:[%s170 + $0x138] sm:$0x1] %v1612
      %1703 = vst [vmem:[%s170 + $0x140] sm:$0xff] %v1613
      %1704 = vst [vmem:[%s170 + $0x148] sm:$0x1] %v1614
      %1705 = vst [vmem:[%s170 + $0x150] sm:$0xff] %v1615
      %1706 = vst [vmem:[%s170 + $0x158] sm:$0x1] %v1616
      %1707 = vst [vmem:[%s170 + $0x160] sm:$0xff] %v1617
      %1708 = vst [vmem:[%s170 + $0x168] sm:$0x1] %v1618
      %1709 = vst [vmem:[%s170 + $0x170] sm:$0xff] %v1619
      %1710 = vst [vmem:[%s170 + $0x178] sm:$0x1] %v1620
      %1711 = vst [vmem:[%s170 + $0x180] sm:$0xff] %v1621
      %1712 = vst [vmem:[%s170 + $0x188] sm:$0x1] %v1622
      %1713 = vst [vmem:[%s170 + $0x190] sm:$0xff] %v1623
      %1714 = vst [vmem:[%s170 + $0x198] sm:$0x1] %v1624
      %1715 = vst [vmem:[%s170 + $0x1a0] sm:$0xff] %v1625
      %1716 = vst [vmem:[%s170 + $0x1a8] sm:$0x1] %v1626
      %1717 = vst [vmem:[%s170 + $0x1b0] sm:$0xff] %v1627
      %1718 = vst [vmem:[%s170 + $0x1b8] sm:$0x1] %v1628
      %1719 = vst [vmem:[%s170 + $0x1c0] sm:$0xff] %v1629
      %1720 = vst [vmem:[%s170 + $0x1c8] sm:$0x1] %v1630
      %1721 = vst [vmem:[%s170 + $0x1d0] sm:$0xff] %v1631
      %1722 = vst [vmem:[%s170 + $0x1d8] sm:$0x1] %v1632
      %1723 = vst [vmem:[%s170 + $0x1e0] sm:$0xff] %v1633
      %1724 = vst [vmem:[%s170 + $0x1e8] sm:$0x1] %v1634
      %1725 = vst [vmem:[%s170 + $0x1f0] sm:$0xff] %v1635
      %1726 = vst [vmem:[%s170 + $0x1f8] sm:$0x1] %v1636
      %1727 = vst [vmem:[%s170 + $0x200] sm:$0xff] %v1637
      %1728 = vst [vmem:[%s170 + $0x208] sm:$0x1] %v1638
      %1729 = vst [vmem:[%s170 + $0x210] sm:$0xff] %v1639
      %1730 = vst [vmem:[%s170 + $0x218] sm:$0x1] %v1640
      %1731 = vst [vmem:[%s170 + $0x220] sm:$0xff] %v1641
      %1732 = vst [vmem:[%s170 + $0x228] sm:$0x1] %v1642
      %1733 = vst [vmem:[%s170 + $0x230] sm:$0xff] %v1643
      %1734 = vst [vmem:[%s170 + $0x238] sm:$0x1] %v1644
      %1735 = vst [vmem:[%s170 + $0x240] sm:$0xff] %v1645
      %1736 = vst [vmem:[%s170 + $0x248] sm:$0x1] %v1646
      %1737 = vst [vmem:[%s170 + $0x250] sm:$0xff] %v1647
      %1738 = vst [vmem:[%s170 + $0x258] sm:$0x1] %v1648
      %1739 = vst [vmem:[%s170 + $0x260] sm:$0xff] %v1649
      %1740 = vst [vmem:[%s170 + $0x268] sm:$0x1] %v1650
      %1741 = vst [vmem:[%s170 + $0x270] sm:$0xff] %v1651
      %1742 = vst [vmem:[%s170 + $0x278] sm:$0x1] %v1652
      %1743 = vst [vmem:[%s170 + $0x280] sm:$0xff] %v1653
      %1744 = vst [vmem:[%s170 + $0x288] sm:$0x1] %v1654
      %1745 = vst [vmem:[%s170 + $0x290] sm:$0xff] %v1655
      %1746 = vst [vmem:[%s170 + $0x298] sm:$0x1] %v1656
      %1747 = vst [vmem:[%s170 + $0x2a0] sm:$0xff] %v1657
      %1748 = vst [vmem:[%s170 + $0x2a8] sm:$0x1] %v1658
      %1749 = vst [vmem:[%s170 + $0x2b0] sm:$0xff] %v1659
      %1750 = vst [vmem:[%s170 + $0x2b8] sm:$0x1] %v1660
      %1751 = vst [vmem:[%s170 + $0x2c0] sm:$0xff] %v1661
      %1752 = vst [vmem:[%s170 + $0x2c8] sm:$0x1] %v1662
      %p1753 = scmp.lt.s32.totalorder %s14, 1
      %s1754 = scalar_select %p1753, %s14, 1
      %s1755 = smul.addr %s1754, 90
      %s1756 = smul.addr %s1755, 8
      %s1757 = scalar_lea.vmem %s3, %s1756
      // Predicated region
      $region33: #{conv_transpose3d.1} parent=31 // pred_check
        %p1758 = pneg %p100
      $region34: #{conv_transpose3d.1} parent=31 // pred_check_branch
        %1760 = sbr.rel (%p1758) target = $region36
      $region35: #{conv_transpose3d.1} parent=31 // pred_region
        _
      $region36: #{conv_transpose3d.1} parent=31 // pred_fallthru
        _
    $region32: #{conv_transpose3d.1} parent=5 // pred_fallthru
      _
    %p1761 = scmp.le.s32.totalorder 2, %s9
    // Predicated region
    $region37: #{conv_transpose3d.1} parent=5 // pred_check
      %p1762 = pneg %p1761
    $region38: #{conv_transpose3d.1} parent=5 // pred_check_branch
      %1764 = sbr.rel (%p1762) target = $region40
    $region39: #{conv_transpose3d.1} parent=5 // pred_region
      %s1765 = ssub.s32 %s9, 2
      // Predicated region
      $region41: #{conv_transpose3d.1} parent=39 // pred_check
        %p1766 = pneg %p106
      $region42: #{conv_transpose3d.1} parent=39 // pred_check_branch
        %1768 = sbr.rel (%p1766) target = $region44
      $region43: #{conv_transpose3d.1} parent=39 // pred_region
        %p1769 = scmp.lt.s32.totalorder %s15, 1
        %s1770 = scalar_select %p1769, %s15, 1
        %s1771 = smul.addr %s1770, 90
        %s1772 = smul.addr %s1771, 8
        %s1773 = scalar_lea.vmem %s3, %s1772
      $region44: #{conv_transpose3d.1} parent=39 // pred_fallthru
        _
    $region40: #{conv_transpose3d.1} parent=5 // pred_fallthru
      _
  $region6: #{conv_transpose3d.1} parent=0 // loop_footer
    %s13 = sadd.s32 1, %s9
  $region7: #{conv_transpose3d.1} parent=0 // loop_footer_branch
    %8 = sbr.rel target = $region3
  $region8: #{conv_transpose3d.1} parent=0 // loop_exit
    _

</llo_original>
